<compile_context>
chip_gen: v7x
topology: tpu7x:2x2x1
jax: 0.10.0
libtpu: 0.0.40
codegen_flags: <defaults>
</compile_context>

<pallas_src>
import functools

import jax
import jax.numpy as jnp
from jax.experimental import pallas as pl
from jax.experimental.pallas import tpu as pltpu

LN_EPS = 1e-5                 # PyTorch nn.LayerNorm default
MXU_DTYPE = jnp.bfloat16      # dtype fed to the MXU (accumulation stays f32)


# ---------------------------------------------------------------------------
# Kernel
# ---------------------------------------------------------------------------
def _layernorm(x, gamma, beta):
    mean = jnp.mean(x, axis=-1, keepdims=True)
    var = jnp.mean(jnp.square(x - mean), axis=-1, keepdims=True)
    return (x - mean) * jax.lax.rsqrt(var + LN_EPS) * gamma + beta


def transformer_kernel(x_ref, vec_ref, wqkv_ref, wo_ref, w1_ref, w2_ref, ngb_ref,
                       o_ref, x_state, attn_buf,
                       *, heads, dim_head, tokens, dim, mlp_dim, tb):
    """One (batch block, layer) grid step of the full transformer."""
    l = pl.program_id(1)
    H, Dh, N, D, M = heads, dim_head, tokens, dim, mlp_dim
    HDh = H * Dh

    # First layer for this batch block: load tokens into the resident f32 state.
    @pl.when(l == 0)
    def _init():
        for b in range(tb):                                   # static, small
            x_state[b * N:(b + 1) * N, :] = x_ref[b].astype(jnp.float32)

    x = x_state[...]                                          # (TB*N, D) f32

    # Packed per-layer vectors: [attn_g, attn_b, bo, ff_g, ff_b, b1, b2]
    vecs = vec_ref[0]                                         # (7, C) f32
    attn_g, attn_b = vecs[0:1, :D], vecs[1:2, :D]
    bo = vecs[2:3, :D]
    ff_g, ff_b = vecs[3:4, :D], vecs[4:5, :D]
    b1 = vecs[5:6, :M]
    b2 = vecs[6:7, :D]

    # ---------------- PreNorm(Attention) + residual ----------------
    xn = _layernorm(x, attn_g, attn_b)
    # Single fused QKV projection (q-scale already folded into the weight).
    qkv = jnp.dot(xn.astype(MXU_DTYPE), wqkv_ref[0],
                  preferred_element_type=jnp.float32)         # (TB*N, 3*H*Dh) f32

    for b in range(tb):                                       # static, small
        r0 = b * N
        for h in range(H):                                    # static, small
            c = h * Dh
            q = qkv[r0:r0 + N, c:c + Dh]                      # (N, Dh)
            k = qkv[r0:r0 + N, HDh + c:HDh + c + Dh]
            v = qkv[r0:r0 + N, 2 * HDh + c:2 * HDh + c + Dh]
            s = jnp.einsum('qe,ke->qk', q.astype(MXU_DTYPE), k.astype(MXU_DTYPE),
                           preferred_element_type=jnp.float32)   # (N, N) f32
            s = s - jnp.max(s, axis=-1, keepdims=True)
            p = jnp.exp(s)
            p = p / jnp.sum(p, axis=-1, keepdims=True)           # exact softmax
            o_bh = jnp.dot(p.astype(MXU_DTYPE), v.astype(MXU_DTYPE),
                           preferred_element_type=jnp.float32)   # (N, Dh)
            attn_buf[r0:r0 + N, c:c + Dh] = o_bh.astype(attn_buf.dtype)

    # Single output projection: head reduction happens inside the MXU f32 accumulator.
    attn_out = jnp.dot(attn_buf[...], wo_ref[0],
                       preferred_element_type=jnp.float32) + bo  # (TB*N, D)
    x = attn_out + x                                             # residual (f32)

    # ---------------- PreNorm(FeedForward) + residual ----------------
    xn2 = _layernorm(x, ff_g, ff_b)
    hdn = jnp.dot(xn2.astype(MXU_DTYPE), w1_ref[0],
                  preferred_element_type=jnp.float32) + b1       # (TB*N, M)
    # TODO(synk): switch to erf GELU (approximate=False) for exact nn.GELU parity once
    # lax.erf lowering is confirmed on the target toolchain; tanh-approx rides the EUP.
    hdn = jax.nn.gelu(hdn, approximate=True)
    ff = jnp.dot(hdn.astype(MXU_DTYPE), w2_ref[0],
                 preferred_element_type=jnp.float32) + b2        # (TB*N, D)
    x = ff + x                                                   # residual (f32)

    x_state[...] = x

    # Last layer: final LayerNorm and the only HBM write for this batch block.
    @pl.when(l == pl.num_programs(1) - 1)
    def _final():
        ngb = ngb_ref[...]                                       # (2, D)
        y = _layernorm(x, ngb[0:1, :], ngb[1:2, :])
        for b in range(tb):
            o_ref[b] = y[b * N:(b + 1) * N, :].astype(o_ref.dtype)


# ---------------------------------------------------------------------------
# One-time parameter packing (hoisted out of the per-call path)
# ---------------------------------------------------------------------------
def pack_params(params, heads, dim_head):
    """Stack per-layer weights on a leading depth axis (bf16), fold 1/sqrt(dim_head)
    into the q columns of the fused Wqkv, and pack all small per-layer vectors into a
    single (depth, 7, C) slab. Call ONCE; pass the result into the jitted forward."""
    layers = params["layers"]
    D = layers[0]["attn"]["wqkv"].shape[0]
    M = layers[0]["ff"]["w1"].shape[1]
    HDh = heads * dim_head
    C = max(D, M)

    def stack(fn):
        return jnp.stack([fn(lyr) for lyr in layers], axis=0)

    # Fold the softmax scale into the q third of Wqkv (in f32, before the bf16 cast).
    scale = jnp.concatenate(
        [jnp.full((HDh,), dim_head ** -0.5, jnp.float32),
         jnp.ones((2 * HDh,), jnp.float32)], axis=0)
    wqkv = stack(lambda lyr: lyr["attn"]["wqkv"]) * scale          # (depth, D, 3*HDh)

    def pad_c(v):                                                   # (1, W) -> (1, C)
        return jnp.pad(v, ((0, 0), (0, C - v.shape[-1])))

    def layer_vecs(lyr):
        rows = [lyr["attn"]["ln_g"], lyr["attn"]["ln_b"], lyr["attn"]["bo"],
                lyr["ff"]["ln_g"], lyr["ff"]["ln_b"], lyr["ff"]["b1"], lyr["ff"]["b2"]]
        return jnp.concatenate([pad_c(r) for r in rows], axis=0)    # (7, C)

    return {
        "vecs": jnp.stack([layer_vecs(lyr) for lyr in layers], axis=0),      # (depth,7,C)
        "wqkv": wqkv.astype(MXU_DTYPE),                                      # (depth,D,3HDh)
        "wo": stack(lambda lyr: lyr["attn"]["wo"]).astype(MXU_DTYPE),        # (depth,HDh,D)
        "w1": stack(lambda lyr: lyr["ff"]["w1"]).astype(MXU_DTYPE),          # (depth,D,M)
        "w2": stack(lambda lyr: lyr["ff"]["w2"]).astype(MXU_DTYPE),          # (depth,M,D)
        "norm_gb": jnp.concatenate([params["norm_g"], params["norm_b"]], 0), # (2, D)
    }


# ---------------------------------------------------------------------------
# Wrapper: pallas_call plumbing
# ---------------------------------------------------------------------------
def _pick_batch_block(batch, tokens, max_rows=512):
    """Largest divisor TB of batch with TB*tokens <= max_rows, preferring a batch grid
    extent >= 2 so both v7x TensorCores get work."""
    divs = [d for d in range(1, batch + 1) if batch % d == 0 and d * tokens <= max_rows]
    if not divs:
        return 1
    two_core = [d for d in divs if batch // d >= 2]
    return max(two_core) if two_core else max(divs)


def transformer_forward(x, packed, heads, dim_head, *,
                        batch_block=None, vmem_limit_bytes=64 * 1024 * 1024):
    """Matches Transformer.forward: for each layer x = attn(x)+x ; x = ff(x)+x ; then
    LayerNorm. The entire forward pass is ONE pallas_call with grid (batch/TB, depth)."""
    B, N, D = x.shape
    depth = packed["wqkv"].shape[0]
    HDh = heads * dim_head
    M = packed["w1"].shape[-1]
    C = packed["vecs"].shape[-1]
    TB = batch_block if batch_block is not None else _pick_batch_block(B, N)
    assert B % TB == 0, "batch must be divisible by the batch block"

    kern = functools.partial(transformer_kernel, heads=heads, dim_head=dim_head,
                             tokens=N, dim=D, mlp_dim=M, tb=TB)

    def wspec(shape):                      # stacked per-layer slab, indexed by layer l
        nd = len(shape)
        return pl.BlockSpec((1,) + shape, lambda bi, l, nd=nd: (l,) + (0,) * nd)

    return pl.pallas_call(
        kern,
        out_shape=jax.ShapeDtypeStruct((B, N, D), x.dtype),
        grid=(B // TB, depth),
        in_specs=[
            pl.BlockSpec((TB, N, D), lambda bi, l: (bi, 0, 0)),   # x (fetched once per bi)
            wspec((7, C)),                                        # packed per-layer vectors
            wspec((D, 3 * HDh)),                                  # fused Wqkv (scale folded)
            wspec((HDh, D)),                                      # Wo
            wspec((D, M)),                                        # W1
            wspec((M, D)),                                        # W2
            pl.BlockSpec((2, D), lambda bi, l: (0, 0)),           # final norm gamma/beta
        ],
        out_specs=pl.BlockSpec((TB, N, D), lambda bi, l: (bi, 0, 0)),  # resident across l
        scratch_shapes=[pltpu.VMEM((TB * N, D), jnp.float32),     # running activation
                        pltpu.VMEM((TB * N, HDh), MXU_DTYPE)],    # per-head attn outputs
        compiler_params=pltpu.CompilerParams(
            dimension_semantics=("parallel", "arbitrary"),
            vmem_limit_bytes=vmem_limit_bytes),
    )(x, packed["vecs"], packed["wqkv"], packed["wo"], packed["w1"], packed["w2"],
      packed["norm_gb"])


# ---------------------------------------------------------------------------
# Deterministic parameter init (synthetic; shapes follow the PyTorch module)
# ---------------------------------------------------------------------------
def init_params(key, dim, depth, heads, dim_head, mlp_dim):
    inner = heads * dim_head
    layers = []
    for _ in range(depth):
        key, k1, k2, k3, k4 = jax.random.split(key, 5)
        layers.append({
            "attn": {
                "ln_g": jnp.ones((1, dim), jnp.float32),
                "ln_b": jnp.zeros((1, dim), jnp.float32),
                "wqkv": 0.05 * jax.random.normal(k1, (dim, 3 * inner), jnp.float32),
                "wo":   0.05 * jax.random.normal(k2, (inner, dim), jnp.float32),
                "bo":   jnp.zeros((1, dim), jnp.float32),
            },
            "ff": {
                "ln_g": jnp.ones((1, dim), jnp.float32),
                "ln_b": jnp.zeros((1, dim), jnp.float32),
                "w1":   0.05 * jax.random.normal(k3, (dim, mlp_dim), jnp.float32),
                "b1":   jnp.zeros((1, mlp_dim), jnp.float32),
                "w2":   0.05 * jax.random.normal(k4, (mlp_dim, dim), jnp.float32),
                "b2":   jnp.zeros((1, dim), jnp.float32),
            },
        })
    return {
        "layers": layers,
        "norm_g": jnp.ones((1, dim), jnp.float32),
        "norm_b": jnp.zeros((1, dim), jnp.float32),
    }


# ---------------------------------------------------------------------------
# Pure-JAX f32 reference (exact-erf GELU, exact softmax) for a sanity check
# ---------------------------------------------------------------------------
def _ref_ln(x, g, b):
    mean = jnp.mean(x, axis=-1, keepdims=True)
    var = jnp.mean((x - mean) ** 2, axis=-1, keepdims=True)
    return (x - mean) / jnp.sqrt(var + LN_EPS) * g + b


def reference_forward(x, params, heads, dim_head):
    for layer in params["layers"]:
        a = layer["attn"]
        xn = _ref_ln(x, a["ln_g"], a["ln_b"])
        qkv = xn @ a["wqkv"]
        q, k, v = jnp.split(qkv, 3, axis=-1)

        def split_heads(t):  # (B,N,H*Dh) -> (B,H,N,Dh)
            B, N, _ = t.shape
            return t.reshape(B, N, heads, dim_head).transpose(0, 2, 1, 3)

        q, k, v = split_heads(q), split_heads(k), split_heads(v)
        dots = jnp.einsum("bhid,bhjd->bhij", q, k) * (dim_head ** -0.5)
        attn = jax.nn.softmax(dots, axis=-1)
        out = jnp.einsum("bhij,bhjd->bhid", attn, v)
        B, H, N, Dh = out.shape
        out = out.transpose(0, 2, 1, 3).reshape(B, N, H * Dh)
        x = out @ a["wo"] + a["bo"] + x

        f = layer["ff"]
        xn = _ref_ln(x, f["ln_g"], f["ln_b"])
        h = jax.nn.gelu(xn @ f["w1"] + f["b1"], approximate=False)
        x = h @ f["w2"] + f["b2"] + x
    return _ref_ln(x, params["norm_g"], params["norm_b"])


# ---------------------------------------------------------------------------
if __name__ == "__main__":
    # Small shapes consistent with the module: tokens N=8, dim=32, 4 heads * 8 dim_head.
    # B=4 so the batch-blocked path (TB=2) and a parallel grid extent of 2 are exercised.
    B, N = 4, 8
    dim, depth, heads, dim_head, mlp_dim = 32, 2, 4, 8, 64

    key = jax.random.PRNGKey(0)
    kx, kp = jax.random.split(key)
    x = jax.random.normal(kx, (B, N, dim), jnp.float32)
    params = init_params(kp, dim, depth, heads, dim_head, mlp_dim)

    packed = pack_params(params, heads, dim_head)      # one-time packing (hoisted)
    fwd = jax.jit(functools.partial(transformer_forward, heads=heads, dim_head=dim_head))
    out = jax.block_until_ready(fwd(x, packed))

    ref = reference_forward(x, params, heads, dim_head)
    assert out.shape == (B, N, dim)
    assert jnp.allclose(out, ref, atol=2e-2, rtol=2e-2), "mismatch vs JAX reference"

    print("KERNEL_OK")
</pallas_src>

<mosaic_0001>
module attributes {stable_mosaic.version = 11 : i64} {
  func.func @transformer_kernel(%arg0: i32, %arg1: i32, %arg2: memref<2x8x32xf32, #tpu.memory_space<vmem>>, %arg3: memref<1x7x64xf32, #tpu.memory_space<vmem>>, %arg4: memref<1x32x96xbf16, #tpu.memory_space<vmem>>, %arg5: memref<1x32x32xbf16, #tpu.memory_space<vmem>>, %arg6: memref<1x32x64xbf16, #tpu.memory_space<vmem>>, %arg7: memref<1x64x32xbf16, #tpu.memory_space<vmem>>, %arg8: memref<2x32xf32, #tpu.memory_space<vmem>>, %arg9: memref<2x8x32xf32, #tpu.memory_space<vmem>>, %arg10: memref<16x32xf32, #tpu.memory_space<vmem>>, %arg11: memref<16x32xbf16, #tpu.memory_space<vmem>>) attributes {dimension_semantics = [#tpu.dimension_semantics<parallel>, #tpu.dimension_semantics<arbitrary>], iteration_bounds = array<i64: 2, 2>, scalar_prefetch = 0 : i64, scratch_operands = 2 : i64, tpu.core_type = #tpu.core_type<tc>, window_params = [{transform_indices = @transform_0, window_bounds = array<i64: 2, 8, 32>}, {transform_indices = @transform_1, window_bounds = array<i64: 1, 7, 64>}, {transform_indices = @transform_2, window_bounds = array<i64: 1, 32, 96>}, {transform_indices = @transform_3, window_bounds = array<i64: 1, 32, 32>}, {transform_indices = @transform_4, window_bounds = array<i64: 1, 32, 64>}, {transform_indices = @transform_5, window_bounds = array<i64: 1, 64, 32>}, {pipeline_mode = #tpu.pipeline_mode<synchronous>, transform_indices = @transform_6, window_bounds = array<i64: 2, 32>}, {transform_indices = @transform_7, window_bounds = array<i64: 2, 8, 32>}]} {
    %c0_i32 = arith.constant 0 : i32
    %0 = arith.cmpi eq, %arg1, %c0_i32 : i32
    %1 = arith.extui %0 : i1 to i32
    %c0_i32_0 = arith.constant 0 : i32
    %2 = arith.cmpi ne, %1, %c0_i32_0 : i32
    scf.if %2 {
      %c0_84 = arith.constant 0 : index
      %c0_85 = arith.constant 0 : index
      %c0_86 = arith.constant 0 : index
      %258 = vector.load %arg2[%c0_84, %c0_85, %c0_86] : memref<2x8x32xf32, #tpu.memory_space<vmem>>, vector<1x8x32xf32>
      %259 = vector.shape_cast %258 : vector<1x8x32xf32> to vector<8x32xf32>
      %c0_87 = arith.constant 0 : index
      %c0_88 = arith.constant 0 : index
      %260 = vector.load %arg10[%c0_87, %c0_88] : memref<16x32xf32, #tpu.memory_space<vmem>>, vector<8x32xf32>
      tpu.vector_store %arg10[%c0_87, %c0_88], %259 {strides = array<i32>} : memref<16x32xf32, #tpu.memory_space<vmem>>, vector<8x32xf32>,
      %c1 = arith.constant 1 : index
      %c0_89 = arith.constant 0 : index
      %c0_90 = arith.constant 0 : index
      %261 = vector.load %arg2[%c1, %c0_89, %c0_90] : memref<2x8x32xf32, #tpu.memory_space<vmem>>, vector<1x8x32xf32>
      %262 = vector.shape_cast %261 : vector<1x8x32xf32> to vector<8x32xf32>
      %c8_91 = arith.constant 8 : index
      %c0_92 = arith.constant 0 : index
      %263 = vector.load %arg10[%c8_91, %c0_92] : memref<16x32xf32, #tpu.memory_space<vmem>>, vector<8x32xf32>
      tpu.vector_store %arg10[%c8_91, %c0_92], %262 {strides = array<i32>} : memref<16x32xf32, #tpu.memory_space<vmem>>, vector<8x32xf32>,
    } else {
    }
    %c0 = arith.constant 0 : index
    %c0_1 = arith.constant 0 : index
    %3 = vector.load %arg10[%c0, %c0_1] : memref<16x32xf32, #tpu.memory_space<vmem>>, vector<16x32xf32>
    %c0_2 = arith.constant 0 : index
    %c0_3 = arith.constant 0 : index
    %c0_4 = arith.constant 0 : index
    %4 = vector.load %arg3[%c0_2, %c0_3, %c0_4] : memref<1x7x64xf32, #tpu.memory_space<vmem>>, vector<1x7x64xf32>
    %5 = vector.shape_cast %4 : vector<1x7x64xf32> to vector<7x64xf32>
    %6 = vector.extract_strided_slice %5 {offsets = [0, 0], sizes = [1, 32], strides = [1, 1]} : vector<7x64xf32> to vector<1x32xf32>
    %7 = vector.extract_strided_slice %5 {offsets = [1, 0], sizes = [1, 32], strides = [1, 1]} : vector<7x64xf32> to vector<1x32xf32>
    %8 = vector.extract_strided_slice %5 {offsets = [2, 0], sizes = [1, 32], strides = [1, 1]} : vector<7x64xf32> to vector<1x32xf32>
    %9 = vector.extract_strided_slice %5 {offsets = [3, 0], sizes = [1, 32], strides = [1, 1]} : vector<7x64xf32> to vector<1x32xf32>
    %10 = vector.extract_strided_slice %5 {offsets = [4, 0], sizes = [1, 32], strides = [1, 1]} : vector<7x64xf32> to vector<1x32xf32>
    %11 = vector.extract_strided_slice %5 {offsets = [5, 0], sizes = [1, 64], strides = [1, 1]} : vector<7x64xf32> to vector<1x64xf32>
    %12 = vector.extract_strided_slice %5 {offsets = [6, 0], sizes = [1, 32], strides = [1, 1]} : vector<7x64xf32> to vector<1x32xf32>
    %cst = arith.constant dense<0.000000e+00> : vector<16xf32>
    %13 = vector.multi_reduction <add>, %3, %cst [1] : vector<16x32xf32> to vector<16xf32>
    %14 = vector.shape_cast %13 : vector<16xf32> to vector<16x1xf32>
    %cst_5 = arith.constant 3.200000e+01 : f32
    %15 = vector.broadcast %cst_5 : f32 to vector<16x1xf32>
    %16 = arith.divf %14, %15 : vector<16x1xf32>
    %17 = vector.broadcast %16 : vector<16x1xf32> to vector<16x32xf32>
    %18 = arith.subf %3, %17 : vector<16x32xf32>
    %19 = arith.mulf %18, %18 : vector<16x32xf32>
    %cst_6 = arith.constant dense<0.000000e+00> : vector<16xf32>
    %20 = vector.multi_reduction <add>, %19, %cst_6 [1] : vector<16x32xf32> to vector<16xf32>
    %21 = vector.shape_cast %20 : vector<16xf32> to vector<16x1xf32>
    %cst_7 = arith.constant 3.200000e+01 : f32
    %22 = vector.broadcast %cst_7 : f32 to vector<16x1xf32>
    %23 = arith.divf %21, %22 : vector<16x1xf32>
    %24 = vector.broadcast %16 : vector<16x1xf32> to vector<16x32xf32>
    %25 = arith.subf %3, %24 : vector<16x32xf32>
    %cst_8 = arith.constant 9.99999974E-6 : f32
    %26 = vector.broadcast %cst_8 : f32 to vector<16x1xf32>
    %27 = arith.addf %23, %26 : vector<16x1xf32>
    %28 = math.rsqrt %27 : vector<16x1xf32>
    %29 = vector.broadcast %28 : vector<16x1xf32> to vector<16x32xf32>
    %30 = arith.mulf %25, %29 : vector<16x32xf32>
    %31 = vector.broadcast %6 : vector<1x32xf32> to vector<16x32xf32>
    %32 = arith.mulf %30, %31 : vector<16x32xf32>
    %33 = vector.broadcast %7 : vector<1x32xf32> to vector<16x32xf32>
    %34 = arith.addf %32, %33 : vector<16x32xf32>
    %35 = arith.truncf %34 : vector<16x32xf32> to vector<16x32xbf16>
    %c0_9 = arith.constant 0 : index
    %c0_10 = arith.constant 0 : index
    %c0_11 = arith.constant 0 : index
    %36 = vector.load %arg4[%c0_9, %c0_10, %c0_11] : memref<1x32x96xbf16, #tpu.memory_space<vmem>>, vector<1x32x96xbf16>
    %37 = vector.shape_cast %36 : vector<1x32x96xbf16> to vector<32x96xbf16>
    %cst_12 = arith.constant dense<0.000000e+00> : vector<16x96xf32>
    %38 = tpu.matmul %35, %37, %cst_12 {dimension_numbers = #tpu.dot_dimension_numbers<[1], [0], [0], [1], [0, 0, 1, 1], [], []>} : vector<16x32xbf16>, vector<32x96xbf16>, vector<16x96xf32> -> vector<16x96xf32>
    %39 = vector.extract_strided_slice %38 {offsets = [0, 0], sizes = [8, 8], strides = [1, 1]} : vector<16x96xf32> to vector<8x8xf32>
    %40 = vector.extract_strided_slice %38 {offsets = [0, 32], sizes = [8, 8], strides = [1, 1]} : vector<16x96xf32> to vector<8x8xf32>
    %41 = vector.extract_strided_slice %38 {offsets = [0, 64], sizes = [8, 8], strides = [1, 1]} : vector<16x96xf32> to vector<8x8xf32>
    %42 = arith.truncf %39 : vector<8x8xf32> to vector<8x8xbf16>
    %43 = arith.truncf %40 : vector<8x8xf32> to vector<8x8xbf16>
    "tpu.trace_start"() <{level = 10 : i32, message = "qe,ke->qk"}> : () -> ()
    %cst_13 = arith.constant dense<0.000000e+00> : vector<8x8xf32>
    %44 = tpu.matmul %42, %43, %cst_13 {dimension_numbers = #tpu.dot_dimension_numbers<[1], [1], [0], [0], [0, 0, 1, 0], [], []>} : vector<8x8xbf16>, vector<8x8xbf16>, vector<8x8xf32> -> vector<8x8xf32>
    "tpu.trace_stop"() : () -> ()
    %cst_14 = arith.constant dense<0xFF800000> : vector<8xf32>
    %45 = vector.multi_reduction <maximumf>, %44, %cst_14 [1] : vector<8x8xf32> to vector<8xf32>
    %46 = vector.shape_cast %45 : vector<8xf32> to vector<8x1xf32>
    %47 = vector.broadcast %46 : vector<8x1xf32> to vector<8x8xf32>
    %48 = arith.subf %44, %47 : vector<8x8xf32>
    %49 = math.exp %48 : vector<8x8xf32>
    %cst_15 = arith.constant dense<0.000000e+00> : vector<8xf32>
    %50 = vector.multi_reduction <add>, %49, %cst_15 [1] : vector<8x8xf32> to vector<8xf32>
    %51 = vector.shape_cast %50 : vector<8xf32> to vector<8x1xf32>
    %52 = vector.broadcast %51 : vector<8x1xf32> to vector<8x8xf32>
    %53 = arith.divf %49, %52 : vector<8x8xf32>
    %54 = arith.truncf %53 : vector<8x8xf32> to vector<8x8xbf16>
    %55 = arith.truncf %41 : vector<8x8xf32> to vector<8x8xbf16>
    %cst_16 = arith.constant dense<0.000000e+00> : vector<8x8xf32>
    %56 = tpu.matmul %54, %55, %cst_16 {dimension_numbers = #tpu.dot_dimension_numbers<[1], [0], [0], [1], [0, 0, 1, 1], [], []>} : vector<8x8xbf16>, vector<8x8xbf16>, vector<8x8xf32> -> vector<8x8xf32>
    %57 = arith.truncf %56 : vector<8x8xf32> to vector<8x8xbf16>
    %c0_17 = arith.constant 0 : index
    %c0_18 = arith.constant 0 : index
    %58 = vector.load %arg11[%c0_17, %c0_18] : memref<16x32xbf16, #tpu.memory_space<vmem>>, vector<8x8xbf16>
    tpu.vector_store %arg11[%c0_17, %c0_18], %57 {strides = array<i32>} : memref<16x32xbf16, #tpu.memory_space<vmem>>, vector<8x8xbf16>,
    %59 = vector.extract_strided_slice %38 {offsets = [0, 8], sizes = [8, 8], strides = [1, 1]} : vector<16x96xf32> to vector<8x8xf32>
    %60 = vector.extract_strided_slice %38 {offsets = [0, 40], sizes = [8, 8], strides = [1, 1]} : vector<16x96xf32> to vector<8x8xf32>
    %61 = vector.extract_strided_slice %38 {offsets = [0, 72], sizes = [8, 8], strides = [1, 1]} : vector<16x96xf32> to vector<8x8xf32>
    %62 = arith.truncf %59 : vector<8x8xf32> to vector<8x8xbf16>
    %63 = arith.truncf %60 : vector<8x8xf32> to vector<8x8xbf16>
    "tpu.trace_start"() <{level = 10 : i32, message = "qe,ke->qk"}> : () -> ()
    %cst_19 = arith.constant dense<0.000000e+00> : vector<8x8xf32>
    %64 = tpu.matmul %62, %63, %cst_19 {dimension_numbers = #tpu.dot_dimension_numbers<[1], [1], [0], [0], [0, 0, 1, 0], [], []>} : vector<8x8xbf16>, vector<8x8xbf16>, vector<8x8xf32> -> vector<8x8xf32>
    "tpu.trace_stop"() : () -> ()
    %cst_20 = arith.constant dense<0xFF800000> : vector<8xf32>
    %65 = vector.multi_reduction <maximumf>, %64, %cst_20 [1] : vector<8x8xf32> to vector<8xf32>
    %66 = vector.shape_cast %65 : vector<8xf32> to vector<8x1xf32>
    %67 = vector.broadcast %66 : vector<8x1xf32> to vector<8x8xf32>
    %68 = arith.subf %64, %67 : vector<8x8xf32>
    %69 = math.exp %68 : vector<8x8xf32>
    %cst_21 = arith.constant dense<0.000000e+00> : vector<8xf32>
    %70 = vector.multi_reduction <add>, %69, %cst_21 [1] : vector<8x8xf32> to vector<8xf32>
    %71 = vector.shape_cast %70 : vector<8xf32> to vector<8x1xf32>
    %72 = vector.broadcast %71 : vector<8x1xf32> to vector<8x8xf32>
    %73 = arith.divf %69, %72 : vector<8x8xf32>
    %74 = arith.truncf %73 : vector<8x8xf32> to vector<8x8xbf16>
    %75 = arith.truncf %61 : vector<8x8xf32> to vector<8x8xbf16>
    %cst_22 = arith.constant dense<0.000000e+00> : vector<8x8xf32>
    %76 = tpu.matmul %74, %75, %cst_22 {dimension_numbers = #tpu.dot_dimension_numbers<[1], [0], [0], [1], [0, 0, 1, 1], [], []>} : vector<8x8xbf16>, vector<8x8xbf16>, vector<8x8xf32> -> vector<8x8xf32>
    %77 = arith.truncf %76 : vector<8x8xf32> to vector<8x8xbf16>
    %c0_23 = arith.constant 0 : index
    %c8 = arith.constant 8 : index
    %78 = vector.load %arg11[%c0_23, %c8] : memref<16x32xbf16, #tpu.memory_space<vmem>>, vector<8x8xbf16>
    tpu.vector_store %arg11[%c0_23, %c8], %77 {strides = array<i32>} : memref<16x32xbf16, #tpu.memory_space<vmem>>, vector<8x8xbf16>,
    %79 = vector.extract_strided_slice %38 {offsets = [0, 16], sizes = [8, 8], strides = [1, 1]} : vector<16x96xf32> to vector<8x8xf32>
    %80 = vector.extract_strided_slice %38 {offsets = [0, 48], sizes = [8, 8], strides = [1, 1]} : vector<16x96xf32> to vector<8x8xf32>
    %81 = vector.extract_strided_slice %38 {offsets = [0, 80], sizes = [8, 8], strides = [1, 1]} : vector<16x96xf32> to vector<8x8xf32>
    %82 = arith.truncf %79 : vector<8x8xf32> to vector<8x8xbf16>
    %83 = arith.truncf %80 : vector<8x8xf32> to vector<8x8xbf16>
    "tpu.trace_start"() <{level = 10 : i32, message = "qe,ke->qk"}> : () -> ()
    %cst_24 = arith.constant dense<0.000000e+00> : vector<8x8xf32>
    %84 = tpu.matmul %82, %83, %cst_24 {dimension_numbers = #tpu.dot_dimension_numbers<[1], [1], [0], [0], [0, 0, 1, 0], [], []>} : vector<8x8xbf16>, vector<8x8xbf16>, vector<8x8xf32> -> vector<8x8xf32>
    "tpu.trace_stop"() : () -> ()
    %cst_25 = arith.constant dense<0xFF800000> : vector<8xf32>
    %85 = vector.multi_reduction <maximumf>, %84, %cst_25 [1] : vector<8x8xf32> to vector<8xf32>
    %86 = vector.shape_cast %85 : vector<8xf32> to vector<8x1xf32>
    %87 = vector.broadcast %86 : vector<8x1xf32> to vector<8x8xf32>
    %88 = arith.subf %84, %87 : vector<8x8xf32>
    %89 = math.exp %88 : vector<8x8xf32>
    %cst_26 = arith.constant dense<0.000000e+00> : vector<8xf32>
    %90 = vector.multi_reduction <add>, %89, %cst_26 [1] : vector<8x8xf32> to vector<8xf32>
    %91 = vector.shape_cast %90 : vector<8xf32> to vector<8x1xf32>
    %92 = vector.broadcast %91 : vector<8x1xf32> to vector<8x8xf32>
    %93 = arith.divf %89, %92 : vector<8x8xf32>
    %94 = arith.truncf %93 : vector<8x8xf32> to vector<8x8xbf16>
    %95 = arith.truncf %81 : vector<8x8xf32> to vector<8x8xbf16>
    %cst_27 = arith.constant dense<0.000000e+00> : vector<8x8xf32>
    %96 = tpu.matmul %94, %95, %cst_27 {dimension_numbers = #tpu.dot_dimension_numbers<[1], [0], [0], [1], [0, 0, 1, 1], [], []>} : vector<8x8xbf16>, vector<8x8xbf16>, vector<8x8xf32> -> vector<8x8xf32>
    %97 = arith.truncf %96 : vector<8x8xf32> to vector<8x8xbf16>
    %c0_28 = arith.constant 0 : index
    %c16 = arith.constant 16 : index
    %98 = vector.load %arg11[%c0_28, %c16] : memref<16x32xbf16, #tpu.memory_space<vmem>>, vector<8x8xbf16>
    tpu.vector_store %arg11[%c0_28, %c16], %97 {strides = array<i32>} : memref<16x32xbf16, #tpu.memory_space<vmem>>, vector<8x8xbf16>,
    %99 = vector.extract_strided_slice %38 {offsets = [0, 24], sizes = [8, 8], strides = [1, 1]} : vector<16x96xf32> to vector<8x8xf32>
    %100 = vector.extract_strided_slice %38 {offsets = [0, 56], sizes = [8, 8], strides = [1, 1]} : vector<16x96xf32> to vector<8x8xf32>
    %101 = vector.extract_strided_slice %38 {offsets = [0, 88], sizes = [8, 8], strides = [1, 1]} : vector<16x96xf32> to vector<8x8xf32>
    %102 = arith.truncf %99 : vector<8x8xf32> to vector<8x8xbf16>
    %103 = arith.truncf %100 : vector<8x8xf32> to vector<8x8xbf16>
    "tpu.trace_start"() <{level = 10 : i32, message = "qe,ke->qk"}> : () -> ()
    %cst_29 = arith.constant dense<0.000000e+00> : vector<8x8xf32>
    %104 = tpu.matmul %102, %103, %cst_29 {dimension_numbers = #tpu.dot_dimension_numbers<[1], [1], [0], [0], [0, 0, 1, 0], [], []>} : vector<8x8xbf16>, vector<8x8xbf16>, vector<8x8xf32> -> vector<8x8xf32>
    "tpu.trace_stop"() : () -> ()
    %cst_30 = arith.constant dense<0xFF800000> : vector<8xf32>
    %105 = vector.multi_reduction <maximumf>, %104, %cst_30 [1] : vector<8x8xf32> to vector<8xf32>
    %106 = vector.shape_cast %105 : vector<8xf32> to vector<8x1xf32>
    %107 = vector.broadcast %106 : vector<8x1xf32> to vector<8x8xf32>
    %108 = arith.subf %104, %107 : vector<8x8xf32>
    %109 = math.exp %108 : vector<8x8xf32>
    %cst_31 = arith.constant dense<0.000000e+00> : vector<8xf32>
    %110 = vector.multi_reduction <add>, %109, %cst_31 [1] : vector<8x8xf32> to vector<8xf32>
    %111 = vector.shape_cast %110 : vector<8xf32> to vector<8x1xf32>
    %112 = vector.broadcast %111 : vector<8x1xf32> to vector<8x8xf32>
    %113 = arith.divf %109, %112 : vector<8x8xf32>
    %114 = arith.truncf %113 : vector<8x8xf32> to vector<8x8xbf16>
    %115 = arith.truncf %101 : vector<8x8xf32> to vector<8x8xbf16>
    %cst_32 = arith.constant dense<0.000000e+00> : vector<8x8xf32>
    %116 = tpu.matmul %114, %115, %cst_32 {dimension_numbers = #tpu.dot_dimension_numbers<[1], [0], [0], [1], [0, 0, 1, 1], [], []>} : vector<8x8xbf16>, vector<8x8xbf16>, vector<8x8xf32> -> vector<8x8xf32>
    %117 = arith.truncf %116 : vector<8x8xf32> to vector<8x8xbf16>
    %c0_33 = arith.constant 0 : index
    %c24 = arith.constant 24 : index
    %118 = vector.load %arg11[%c0_33, %c24] : memref<16x32xbf16, #tpu.memory_space<vmem>>, vector<8x8xbf16>
    tpu.vector_store %arg11[%c0_33, %c24], %117 {strides = array<i32>} : memref<16x32xbf16, #tpu.memory_space<vmem>>, vector<8x8xbf16>,
    %119 = vector.extract_strided_slice %38 {offsets = [8, 0], sizes = [8, 8], strides = [1, 1]} : vector<16x96xf32> to vector<8x8xf32>
    %120 = vector.extract_strided_slice %38 {offsets = [8, 32], sizes = [8, 8], strides = [1, 1]} : vector<16x96xf32> to vector<8x8xf32>
    %121 = vector.extract_strided_slice %38 {offsets = [8, 64], sizes = [8, 8], strides = [1, 1]} : vector<16x96xf32> to vector<8x8xf32>
    %122 = arith.truncf %119 : vector<8x8xf32> to vector<8x8xbf16>
    %123 = arith.truncf %120 : vector<8x8xf32> to vector<8x8xbf16>
    "tpu.trace_start"() <{level = 10 : i32, message = "qe,ke->qk"}> : () -> ()
    %cst_34 = arith.constant dense<0.000000e+00> : vector<8x8xf32>
    %124 = tpu.matmul %122, %123, %cst_34 {dimension_numbers = #tpu.dot_dimension_numbers<[1], [1], [0], [0], [0, 0, 1, 0], [], []>} : vector<8x8xbf16>, vector<8x8xbf16>, vector<8x8xf32> -> vector<8x8xf32>
    "tpu.trace_stop"() : () -> ()
    %cst_35 = arith.constant dense<0xFF800000> : vector<8xf32>
    %125 = vector.multi_reduction <maximumf>, %124, %cst_35 [1] : vector<8x8xf32> to vector<8xf32>
    %126 = vector.shape_cast %125 : vector<8xf32> to vector<8x1xf32>
    %127 = vector.broadcast %126 : vector<8x1xf32> to vector<8x8xf32>
    %128 = arith.subf %124, %127 : vector<8x8xf32>
    %129 = math.exp %128 : vector<8x8xf32>
    %cst_36 = arith.constant dense<0.000000e+00> : vector<8xf32>
    %130 = vector.multi_reduction <add>, %129, %cst_36 [1] : vector<8x8xf32> to vector<8xf32>
    %131 = vector.shape_cast %130 : vector<8xf32> to vector<8x1xf32>
    %132 = vector.broadcast %131 : vector<8x1xf32> to vector<8x8xf32>
    %133 = arith.divf %129, %132 : vector<8x8xf32>
    %134 = arith.truncf %133 : vector<8x8xf32> to vector<8x8xbf16>
    %135 = arith.truncf %121 : vector<8x8xf32> to vector<8x8xbf16>
    %cst_37 = arith.constant dense<0.000000e+00> : vector<8x8xf32>
    %136 = tpu.matmul %134, %135, %cst_37 {dimension_numbers = #tpu.dot_dimension_numbers<[1], [0], [0], [1], [0, 0, 1, 1], [], []>} : vector<8x8xbf16>, vector<8x8xbf16>, vector<8x8xf32> -> vector<8x8xf32>
    %137 = arith.truncf %136 : vector<8x8xf32> to vector<8x8xbf16>
    %c8_38 = arith.constant 8 : index
    %c0_39 = arith.constant 0 : index
    %138 = vector.load %arg11[%c8_38, %c0_39] : memref<16x32xbf16, #tpu.memory_space<vmem>>, vector<8x8xbf16>
    tpu.vector_store %arg11[%c8_38, %c0_39], %137 {strides = array<i32>} : memref<16x32xbf16, #tpu.memory_space<vmem>>, vector<8x8xbf16>,
    %139 = vector.extract_strided_slice %38 {offsets = [8, 8], sizes = [8, 8], strides = [1, 1]} : vector<16x96xf32> to vector<8x8xf32>
    %140 = vector.extract_strided_slice %38 {offsets = [8, 40], sizes = [8, 8], strides = [1, 1]} : vector<16x96xf32> to vector<8x8xf32>
    %141 = vector.extract_strided_slice %38 {offsets = [8, 72], sizes = [8, 8], strides = [1, 1]} : vector<16x96xf32> to vector<8x8xf32>
    %142 = arith.truncf %139 : vector<8x8xf32> to vector<8x8xbf16>
    %143 = arith.truncf %140 : vector<8x8xf32> to vector<8x8xbf16>
    "tpu.trace_start"() <{level = 10 : i32, message = "qe,ke->qk"}> : () -> ()
    %cst_40 = arith.constant dense<0.000000e+00> : vector<8x8xf32>
    %144 = tpu.matmul %142, %143, %cst_40 {dimension_numbers = #tpu.dot_dimension_numbers<[1], [1], [0], [0], [0, 0, 1, 0], [], []>} : vector<8x8xbf16>, vector<8x8xbf16>, vector<8x8xf32> -> vector<8x8xf32>
    "tpu.trace_stop"() : () -> ()
    %cst_41 = arith.constant dense<0xFF800000> : vector<8xf32>
    %145 = vector.multi_reduction <maximumf>, %144, %cst_41 [1] : vector<8x8xf32> to vector<8xf32>
    %146 = vector.shape_cast %145 : vector<8xf32> to vector<8x1xf32>
    %147 = vector.broadcast %146 : vector<8x1xf32> to vector<8x8xf32>
    %148 = arith.subf %144, %147 : vector<8x8xf32>
    %149 = math.exp %148 : vector<8x8xf32>
    %cst_42 = arith.constant dense<0.000000e+00> : vector<8xf32>
    %150 = vector.multi_reduction <add>, %149, %cst_42 [1] : vector<8x8xf32> to vector<8xf32>
    %151 = vector.shape_cast %150 : vector<8xf32> to vector<8x1xf32>
    %152 = vector.broadcast %151 : vector<8x1xf32> to vector<8x8xf32>
    %153 = arith.divf %149, %152 : vector<8x8xf32>
    %154 = arith.truncf %153 : vector<8x8xf32> to vector<8x8xbf16>
    %155 = arith.truncf %141 : vector<8x8xf32> to vector<8x8xbf16>
    %cst_43 = arith.constant dense<0.000000e+00> : vector<8x8xf32>
    %156 = tpu.matmul %154, %155, %cst_43 {dimension_numbers = #tpu.dot_dimension_numbers<[1], [0], [0], [1], [0, 0, 1, 1], [], []>} : vector<8x8xbf16>, vector<8x8xbf16>, vector<8x8xf32> -> vector<8x8xf32>
    %157 = arith.truncf %156 : vector<8x8xf32> to vector<8x8xbf16>
    %c8_44 = arith.constant 8 : index
    %c8_45 = arith.constant 8 : index
    %158 = vector.load %arg11[%c8_44, %c8_45] : memref<16x32xbf16, #tpu.memory_space<vmem>>, vector<8x8xbf16>
    tpu.vector_store %arg11[%c8_44, %c8_45], %157 {strides = array<i32>} : memref<16x32xbf16, #tpu.memory_space<vmem>>, vector<8x8xbf16>,
    %159 = vector.extract_strided_slice %38 {offsets = [8, 16], sizes = [8, 8], strides = [1, 1]} : vector<16x96xf32> to vector<8x8xf32>
    %160 = vector.extract_strided_slice %38 {offsets = [8, 48], sizes = [8, 8], strides = [1, 1]} : vector<16x96xf32> to vector<8x8xf32>
    %161 = vector.extract_strided_slice %38 {offsets = [8, 80], sizes = [8, 8], strides = [1, 1]} : vector<16x96xf32> to vector<8x8xf32>
    %162 = arith.truncf %159 : vector<8x8xf32> to vector<8x8xbf16>
    %163 = arith.truncf %160 : vector<8x8xf32> to vector<8x8xbf16>
    "tpu.trace_start"() <{level = 10 : i32, message = "qe,ke->qk"}> : () -> ()
    %cst_46 = arith.constant dense<0.000000e+00> : vector<8x8xf32>
    %164 = tpu.matmul %162, %163, %cst_46 {dimension_numbers = #tpu.dot_dimension_numbers<[1], [1], [0], [0], [0, 0, 1, 0], [], []>} : vector<8x8xbf16>, vector<8x8xbf16>, vector<8x8xf32> -> vector<8x8xf32>
    "tpu.trace_stop"() : () -> ()
    %cst_47 = arith.constant dense<0xFF800000> : vector<8xf32>
    %165 = vector.multi_reduction <maximumf>, %164, %cst_47 [1] : vector<8x8xf32> to vector<8xf32>
    %166 = vector.shape_cast %165 : vector<8xf32> to vector<8x1xf32>
    %167 = vector.broadcast %166 : vector<8x1xf32> to vector<8x8xf32>
    %168 = arith.subf %164, %167 : vector<8x8xf32>
    %169 = math.exp %168 : vector<8x8xf32>
    %cst_48 = arith.constant dense<0.000000e+00> : vector<8xf32>
    %170 = vector.multi_reduction <add>, %169, %cst_48 [1] : vector<8x8xf32> to vector<8xf32>
    %171 = vector.shape_cast %170 : vector<8xf32> to vector<8x1xf32>
    %172 = vector.broadcast %171 : vector<8x1xf32> to vector<8x8xf32>
    %173 = arith.divf %169, %172 : vector<8x8xf32>
    %174 = arith.truncf %173 : vector<8x8xf32> to vector<8x8xbf16>
    %175 = arith.truncf %161 : vector<8x8xf32> to vector<8x8xbf16>
    %cst_49 = arith.constant dense<0.000000e+00> : vector<8x8xf32>
    %176 = tpu.matmul %174, %175, %cst_49 {dimension_numbers = #tpu.dot_dimension_numbers<[1], [0], [0], [1], [0, 0, 1, 1], [], []>} : vector<8x8xbf16>, vector<8x8xbf16>, vector<8x8xf32> -> vector<8x8xf32>
    %177 = arith.truncf %176 : vector<8x8xf32> to vector<8x8xbf16>
    %c8_50 = arith.constant 8 : index
    %c16_51 = arith.constant 16 : index
    %178 = vector.load %arg11[%c8_50, %c16_51] : memref<16x32xbf16, #tpu.memory_space<vmem>>, vector<8x8xbf16>
    tpu.vector_store %arg11[%c8_50, %c16_51], %177 {strides = array<i32>} : memref<16x32xbf16, #tpu.memory_space<vmem>>, vector<8x8xbf16>,
    %179 = vector.extract_strided_slice %38 {offsets = [8, 24], sizes = [8, 8], strides = [1, 1]} : vector<16x96xf32> to vector<8x8xf32>
    %180 = vector.extract_strided_slice %38 {offsets = [8, 56], sizes = [8, 8], strides = [1, 1]} : vector<16x96xf32> to vector<8x8xf32>
    %181 = vector.extract_strided_slice %38 {offsets = [8, 88], sizes = [8, 8], strides = [1, 1]} : vector<16x96xf32> to vector<8x8xf32>
    %182 = arith.truncf %179 : vector<8x8xf32> to vector<8x8xbf16>
    %183 = arith.truncf %180 : vector<8x8xf32> to vector<8x8xbf16>
    "tpu.trace_start"() <{level = 10 : i32, message = "qe,ke->qk"}> : () -> ()
    %cst_52 = arith.constant dense<0.000000e+00> : vector<8x8xf32>
    %184 = tpu.matmul %182, %183, %cst_52 {dimension_numbers = #tpu.dot_dimension_numbers<[1], [1], [0], [0], [0, 0, 1, 0], [], []>} : vector<8x8xbf16>, vector<8x8xbf16>, vector<8x8xf32> -> vector<8x8xf32>
    "tpu.trace_stop"() : () -> ()
    %cst_53 = arith.constant dense<0xFF800000> : vector<8xf32>
    %185 = vector.multi_reduction <maximumf>, %184, %cst_53 [1] : vector<8x8xf32> to vector<8xf32>
    %186 = vector.shape_cast %185 : vector<8xf32> to vector<8x1xf32>
    %187 = vector.broadcast %186 : vector<8x1xf32> to vector<8x8xf32>
    %188 = arith.subf %184, %187 : vector<8x8xf32>
    %189 = math.exp %188 : vector<8x8xf32>
    %cst_54 = arith.constant dense<0.000000e+00> : vector<8xf32>
    %190 = vector.multi_reduction <add>, %189, %cst_54 [1] : vector<8x8xf32> to vector<8xf32>
    %191 = vector.shape_cast %190 : vector<8xf32> to vector<8x1xf32>
    %192 = vector.broadcast %191 : vector<8x1xf32> to vector<8x8xf32>
    %193 = arith.divf %189, %192 : vector<8x8xf32>
    %194 = arith.truncf %193 : vector<8x8xf32> to vector<8x8xbf16>
    %195 = arith.truncf %181 : vector<8x8xf32> to vector<8x8xbf16>
    %cst_55 = arith.constant dense<0.000000e+00> : vector<8x8xf32>
    %196 = tpu.matmul %194, %195, %cst_55 {dimension_numbers = #tpu.dot_dimension_numbers<[1], [0], [0], [1], [0, 0, 1, 1], [], []>} : vector<8x8xbf16>, vector<8x8xbf16>, vector<8x8xf32> -> vector<8x8xf32>
    %197 = arith.truncf %196 : vector<8x8xf32> to vector<8x8xbf16>
    %c8_56 = arith.constant 8 : index
    %c24_57 = arith.constant 24 : index
    %198 = vector.load %arg11[%c8_56, %c24_57] : memref<16x32xbf16, #tpu.memory_space<vmem>>, vector<8x8xbf16>
    tpu.vector_store %arg11[%c8_56, %c24_57], %197 {strides = array<i32>} : memref<16x32xbf16, #tpu.memory_space<vmem>>, vector<8x8xbf16>,
    %c0_58 = arith.constant 0 : index
    %c0_59 = arith.constant 0 : index
    %199 = vector.load %arg11[%c0_58, %c0_59] : memref<16x32xbf16, #tpu.memory_space<vmem>>, vector<16x32xbf16>
    %c0_60 = arith.constant 0 : index
    %c0_61 = arith.constant 0 : index
    %c0_62 = arith.constant 0 : index
    %200 = vector.load %arg5[%c0_60, %c0_61, %c0_62] : memref<1x32x32xbf16, #tpu.memory_space<vmem>>, vector<1x32x32xbf16>
    %201 = vector.shape_cast %200 : vector<1x32x32xbf16> to vector<32x32xbf16>
    %cst_63 = arith.constant dense<0.000000e+00> : vector<16x32xf32>
    %202 = tpu.matmul %199, %201, %cst_63 {dimension_numbers = #tpu.dot_dimension_numbers<[1], [0], [0], [1], [0, 0, 1, 1], [], []>} : vector<16x32xbf16>, vector<32x32xbf16>, vector<16x32xf32> -> vector<16x32xf32>
    %203 = vector.broadcast %8 : vector<1x32xf32> to vector<16x32xf32>
    %204 = arith.addf %202, %203 : vector<16x32xf32>
    %205 = arith.addf %204, %3 : vector<16x32xf32>
    %cst_64 = arith.constant dense<0.000000e+00> : vector<16xf32>
    %206 = vector.multi_reduction <add>, %205, %cst_64 [1] : vector<16x32xf32> to vector<16xf32>
    %207 = vector.shape_cast %206 : vector<16xf32> to vector<16x1xf32>
    %cst_65 = arith.constant 3.200000e+01 : f32
    %208 = vector.broadcast %cst_65 : f32 to vector<16x1xf32>
    %209 = arith.divf %207, %208 : vector<16x1xf32>
    %210 = vector.broadcast %209 : vector<16x1xf32> to vector<16x32xf32>
    %211 = arith.subf %205, %210 : vector<16x32xf32>
    %212 = arith.mulf %211, %211 : vector<16x32xf32>
    %cst_66 = arith.constant dense<0.000000e+00> : vector<16xf32>
    %213 = vector.multi_reduction <add>, %212, %cst_66 [1] : vector<16x32xf32> to vector<16xf32>
    %214 = vector.shape_cast %213 : vector<16xf32> to vector<16x1xf32>
    %cst_67 = arith.constant 3.200000e+01 : f32
    %215 = vector.broadcast %cst_67 : f32 to vector<16x1xf32>
    %216 = arith.divf %214, %215 : vector<16x1xf32>
    %217 = vector.broadcast %209 : vector<16x1xf32> to vector<16x32xf32>
    %218 = arith.subf %205, %217 : vector<16x32xf32>
    %cst_68 = arith.constant 9.99999974E-6 : f32
    %219 = vector.broadcast %cst_68 : f32 to vector<16x1xf32>
    %220 = arith.addf %216, %219 : vector<16x1xf32>
    %221 = math.rsqrt %220 : vector<16x1xf32>
    %222 = vector.broadcast %221 : vector<16x1xf32> to vector<16x32xf32>
    %223 = arith.mulf %218, %222 : vector<16x32xf32>
    %224 = vector.broadcast %9 : vector<1x32xf32> to vector<16x32xf32>
    %225 = arith.mulf %223, %224 : vector<16x32xf32>
    %226 = vector.broadcast %10 : vector<1x32xf32> to vector<16x32xf32>
    %227 = arith.addf %225, %226 : vector<16x32xf32>
    %228 = arith.truncf %227 : vector<16x32xf32> to vector<16x32xbf16>
    %c0_69 = arith.constant 0 : index
    %c0_70 = arith.constant 0 : index
    %c0_71 = arith.constant 0 : index
    %229 = vector.load %arg6[%c0_69, %c0_70, %c0_71] : memref<1x32x64xbf16, #tpu.memory_space<vmem>>, vector<1x32x64xbf16>
    %230 = vector.shape_cast %229 : vector<1x32x64xbf16> to vector<32x64xbf16>
    %cst_72 = arith.constant dense<0.000000e+00> : vector<16x64xf32>
    %231 = tpu.matmul %228, %230, %cst_72 {dimension_numbers = #tpu.dot_dimension_numbers<[1], [0], [0], [1], [0, 0, 1, 1], [], []>} : vector<16x32xbf16>, vector<32x64xbf16>, vector<16x64xf32> -> vector<16x64xf32>
    %232 = vector.broadcast %11 : vector<1x64xf32> to vector<16x64xf32>
    %233 = arith.addf %231, %232 : vector<16x64xf32>
    %234 = arith.mulf %233, %233 : vector<16x64xf32>
    %235 = arith.mulf %233, %234 : vector<16x64xf32>
    %cst_73 = arith.constant 4.471500e-02 : f32
    %236 = vector.broadcast %cst_73 : f32 to vector<16x64xf32>
    %237 = arith.mulf %236, %235 : vector<16x64xf32>
    %238 = arith.addf %233, %237 : vector<16x64xf32>
    %cst_74 = arith.constant 0.797884583 : f32
    %239 = vector.broadcast %cst_74 : f32 to vector<16x64xf32>
    %240 = arith.mulf %239, %238 : vector<16x64xf32>
    %241 = math.tanh %240 : vector<16x64xf32>
    %cst_75 = arith.constant 1.000000e+00 : f32
    %242 = vector.broadcast %cst_75 : f32 to vector<16x64xf32>
    %243 = arith.addf %242, %241 : vector<16x64xf32>
    %cst_76 = arith.constant 5.000000e-01 : f32
    %244 = vector.broadcast %cst_76 : f32 to vector<16x64xf32>
    %245 = arith.mulf %244, %243 : vector<16x64xf32>
    %246 = arith.mulf %233, %245 : vector<16x64xf32>
    %247 = arith.truncf %246 : vector<16x64xf32> to vector<16x64xbf16>
    %c0_77 = arith.constant 0 : index
    %c0_78 = arith.constant 0 : index
    %c0_79 = arith.constant 0 : index
    %248 = vector.load %arg7[%c0_77, %c0_78, %c0_79] : memref<1x64x32xbf16, #tpu.memory_space<vmem>>, vector<1x64x32xbf16>
    %249 = vector.shape_cast %248 : vector<1x64x32xbf16> to vector<64x32xbf16>
    %cst_80 = arith.constant dense<0.000000e+00> : vector<16x32xf32>
    %250 = tpu.matmul %247, %249, %cst_80 {dimension_numbers = #tpu.dot_dimension_numbers<[1], [0], [0], [1], [0, 0, 1, 1], [], []>} : vector<16x64xbf16>, vector<64x32xbf16>, vector<16x32xf32> -> vector<16x32xf32>
    %251 = vector.broadcast %12 : vector<1x32xf32> to vector<16x32xf32>
    %252 = arith.addf %250, %251 : vector<16x32xf32>
    %253 = arith.addf %252, %205 : vector<16x32xf32>
    %c0_81 = arith.constant 0 : index
    %c0_82 = arith.constant 0 : index
    %254 = vector.load %arg10[%c0_81, %c0_82] : memref<16x32xf32, #tpu.memory_space<vmem>>, vector<16x32xf32>
    tpu.vector_store %arg10[%c0_81, %c0_82], %253 {strides = array<i32>} : memref<16x32xf32, #tpu.memory_space<vmem>>, vector<16x32xf32>,
    %c1_i32 = arith.constant 1 : i32
    %255 = arith.cmpi eq, %arg1, %c1_i32 : i32
    %256 = arith.extui %255 : i1 to i32
    %c0_i32_83 = arith.constant 0 : i32
    %257 = arith.cmpi ne, %256, %c0_i32_83 : i32
    scf.if %257 {
      %c0_84 = arith.constant 0 : index
      %c0_85 = arith.constant 0 : index
      %258 = vector.load %arg8[%c0_84, %c0_85] : memref<2x32xf32, #tpu.memory_space<vmem>>, vector<2x32xf32>
      %259 = vector.extract_strided_slice %258 {offsets = [0, 0], sizes = [1, 32], strides = [1, 1]} : vector<2x32xf32> to vector<1x32xf32>
      %260 = vector.extract_strided_slice %258 {offsets = [1, 0], sizes = [1, 32], strides = [1, 1]} : vector<2x32xf32> to vector<1x32xf32>
      %cst_86 = arith.constant dense<0.000000e+00> : vector<16xf32>
      %261 = vector.multi_reduction <add>, %253, %cst_86 [1] : vector<16x32xf32> to vector<16xf32>
      %262 = vector.shape_cast %261 : vector<16xf32> to vector<16x1xf32>
      %cst_87 = arith.constant 3.200000e+01 : f32
      %263 = vector.broadcast %cst_87 : f32 to vector<16x1xf32>
      %264 = arith.divf %262, %263 : vector<16x1xf32>
      %265 = vector.broadcast %264 : vector<16x1xf32> to vector<16x32xf32>
      %266 = arith.subf %253, %265 : vector<16x32xf32>
      %267 = arith.mulf %266, %266 : vector<16x32xf32>
      %cst_88 = arith.constant dense<0.000000e+00> : vector<16xf32>
      %268 = vector.multi_reduction <add>, %267, %cst_88 [1] : vector<16x32xf32> to vector<16xf32>
      %269 = vector.shape_cast %268 : vector<16xf32> to vector<16x1xf32>
      %cst_89 = arith.constant 3.200000e+01 : f32
      %270 = vector.broadcast %cst_89 : f32 to vector<16x1xf32>
      %271 = arith.divf %269, %270 : vector<16x1xf32>
      %272 = vector.broadcast %264 : vector<16x1xf32> to vector<16x32xf32>
      %273 = arith.subf %253, %272 : vector<16x32xf32>
      %cst_90 = arith.constant 9.99999974E-6 : f32
      %274 = vector.broadcast %cst_90 : f32 to vector<16x1xf32>
      %275 = arith.addf %271, %274 : vector<16x1xf32>
      %276 = math.rsqrt %275 : vector<16x1xf32>
      %277 = vector.broadcast %276 : vector<16x1xf32> to vector<16x32xf32>
      %278 = arith.mulf %273, %277 : vector<16x32xf32>
      %279 = vector.broadcast %259 : vector<1x32xf32> to vector<16x32xf32>
      %280 = arith.mulf %278, %279 : vector<16x32xf32>
      %281 = vector.broadcast %260 : vector<1x32xf32> to vector<16x32xf32>
      %282 = arith.addf %280, %281 : vector<16x32xf32>
      %283 = vector.extract_strided_slice %282 {offsets = [0, 0], sizes = [8, 32], strides = [1, 1]} : vector<16x32xf32> to vector<8x32xf32>
      %c0_91 = arith.constant 0 : index
      %c0_92 = arith.constant 0 : index
      %c0_93 = arith.constant 0 : index
      %284 = vector.load %arg9[%c0_91, %c0_92, %c0_93] : memref<2x8x32xf32, #tpu.memory_space<vmem>>, vector<1x8x32xf32>
      %285 = vector.shape_cast %284 : vector<1x8x32xf32> to vector<8x32xf32>
      %286 = vector.shape_cast %283 : vector<8x32xf32> to vector<1x8x32xf32>
      tpu.vector_store %arg9[%c0_91, %c0_92, %c0_93], %286 {strides = array<i32>} : memref<2x8x32xf32, #tpu.memory_space<vmem>>, vector<1x8x32xf32>,
      %287 = vector.extract_strided_slice %282 {offsets = [8, 0], sizes = [8, 32], strides = [1, 1]} : vector<16x32xf32> to vector<8x32xf32>
      %c1 = arith.constant 1 : index
      %c0_94 = arith.constant 0 : index
      %c0_95 = arith.constant 0 : index
      %288 = vector.load %arg9[%c1, %c0_94, %c0_95] : memref<2x8x32xf32, #tpu.memory_space<vmem>>, vector<1x8x32xf32>
      %289 = vector.shape_cast %288 : vector<1x8x32xf32> to vector<8x32xf32>
      %290 = vector.shape_cast %287 : vector<8x32xf32> to vector<1x8x32xf32>
      tpu.vector_store %arg9[%c1, %c0_94, %c0_95], %290 {strides = array<i32>} : memref<2x8x32xf32, #tpu.memory_space<vmem>>, vector<1x8x32xf32>,
    } else {
    }
    return
  }
  func.func @transform_0(%arg0: i32, %arg1: i32) -> (i32, i32, i32) {
    %c0_i32 = arith.constant 0 : i32
    %c0_i32_0 = arith.constant 0 : i32
    %c0_i32_1 = arith.constant 0 : i32
    return %arg0, %c0_i32, %c0_i32_0 : i32, i32, i32
  }
  func.func @transform_1(%arg0: i32, %arg1: i32) -> (i32, i32, i32) {
    %c0_i32 = arith.constant 0 : i32
    %c0_i32_0 = arith.constant 0 : i32
    %c0_i32_1 = arith.constant 0 : i32
    return %arg1, %c0_i32, %c0_i32_0 : i32, i32, i32
  }
  func.func @transform_2(%arg0: i32, %arg1: i32) -> (i32, i32, i32) {
    %c0_i32 = arith.constant 0 : i32
    %c0_i32_0 = arith.constant 0 : i32
    %c0_i32_1 = arith.constant 0 : i32
    return %arg1, %c0_i32, %c0_i32_0 : i32, i32, i32
  }
  func.func @transform_3(%arg0: i32, %arg1: i32) -> (i32, i32, i32) {
    %c0_i32 = arith.constant 0 : i32
    %c0_i32_0 = arith.constant 0 : i32
    %c0_i32_1 = arith.constant 0 : i32
    return %arg1, %c0_i32, %c0_i32_0 : i32, i32, i32
  }
  func.func @transform_4(%arg0: i32, %arg1: i32) -> (i32, i32, i32) {
    %c0_i32 = arith.constant 0 : i32
    %c0_i32_0 = arith.constant 0 : i32
    %c0_i32_1 = arith.constant 0 : i32
    return %arg1, %c0_i32, %c0_i32_0 : i32, i32, i32
  }
  func.func @transform_5(%arg0: i32, %arg1: i32) -> (i32, i32, i32) {
    %c0_i32 = arith.constant 0 : i32
    %c0_i32_0 = arith.constant 0 : i32
    %c0_i32_1 = arith.constant 0 : i32
    return %arg1, %c0_i32, %c0_i32_0 : i32, i32, i32
  }
  func.func @transform_6(%arg0: i32, %arg1: i32) -> (i32, i32) {
    %c0_i32 = arith.constant 0 : i32
    %c0_i32_0 = arith.constant 0 : i32
    %c0_i32_1 = arith.constant 0 : i32
    return %c0_i32, %c0_i32_0 : i32, i32
  }
  func.func @transform_7(%arg0: i32, %arg1: i32) -> (i32, i32, i32) {
    %c0_i32 = arith.constant 0 : i32
    %c0_i32_0 = arith.constant 0 : i32
    %c0_i32_1 = arith.constant 0 : i32
    return %arg0, %c0_i32, %c0_i32_0 : i32, i32, i32
  }
}

</mosaic_0001>

<llo_original>
// kernel: transformer_forward.1
$region0: #{transformer_forward.1}
  #allocation0 [shape = 'u32[]', space=smem, size = 0x4, offset = 0x4, fixed_abs, tag = 'smem constant byte address 0x4 - core index']
  #allocation1 [shape = 'u32[144,128]{1,0:T(1,128)}', space=vmem, size = 0x12000, scoped, tag = 'internal scratch']
  #allocation2 [shape = 'f32[16,32]{1,0:T(8,128)}', space=vmem, size = 0x2000, scoped, tag = 'scratch operand']
  #allocation3 [shape = 'bf16[16,32]{1,0:T(16,128)(2,1)}', space=vmem, size = 0x1000, scoped, tag = 'scratch operand']
  %s0 = inlined_call_operand.hbm [shape: f32[4,8,32], index: 0, kind: input, shape index: {}]
  %s1 = inlined_call_operand.hbm [shape: f32[2,7,64], index: 1, kind: input, shape index: {}]
  %s2 = inlined_call_operand.hbm [shape: bf16[2,32,96], index: 2, kind: input, shape index: {}]
  %s3 = inlined_call_operand.hbm [shape: bf16[2,32,32], index: 3, kind: input, shape index: {}]
  %s4 = inlined_call_operand.hbm [shape: bf16[2,32,64], index: 4, kind: input, shape index: {}]
  %s5 = inlined_call_operand.hbm [shape: bf16[2,64,32], index: 5, kind: input, shape index: {}]
  %s6 = inlined_call_operand.hbm [shape: f32[2,32], index: 6, kind: input, shape index: {}]
  %s7 = inlined_call_operand.hbm [shape: f32[4,8,32], index: 7, kind: output, shape index: {}]
  %s8 = sld [smem:[#allocation0]]
  $region97: #{transformer_forward.1} parent=0
    _
  %s10 = ssub.s32 1, %s8
  %s11 = scalar_select 0, %s10, %s8
  $region1: #{transformer_forward.1} parent=0
    #allocation4 [shape = 'u8[16384]{0}', space=vmem, size = 0x4000, scoped, tag = 'input window, operand 0']
    #allocation5 [shape = 's32[2]{0}', space=sflag, size = 0x8, scoped, tag = 'scoped memory for transformer_forward.1']
    #allocation6 [shape = 's32[2]{0}', space=sflag, size = 0x8, scoped, tag = 'scoped memory for transformer_forward.1']
    #allocation7 [shape = 'u8[8192]{0}', space=vmem, size = 0x2000, scoped, tag = 'input window, operand 1']
    #allocation8 [shape = 's32[2]{0}', space=sflag, size = 0x8, scoped, tag = 'scoped memory for transformer_forward.1']
    #allocation9 [shape = 'u8[16384]{0}', space=vmem, size = 0x4000, scoped, tag = 'input window, operand 2']
    #allocation10 [shape = 'u8[16384]{0}', space=vmem, size = 0x4000, scoped, tag = 'input window, operand 3']
    #allocation11 [shape = 's32[2]{0}', space=sflag, size = 0x8, scoped, tag = 'scoped memory for transformer_forward.1']
    #allocation12 [shape = 'u8[16384]{0}', space=vmem, size = 0x4000, scoped, tag = 'input window, operand 4']
    #allocation13 [shape = 'u8[32768]{0}', space=vmem, size = 0x8000, scoped, tag = 'input window, operand 5']
    #allocation14 [shape = 's32[2]{0}', space=sflag, size = 0x8, scoped, tag = 'scoped memory for transformer_forward.1']
    #allocation15 [shape = 'u8[1024]{0}', space=vmem, size = 0x400, scoped, tag = 'input window, operand 6, single buffered']
    #allocation16 [shape = 'u8[16384]{0}', space=vmem, size = 0x4000, scoped, tag = 'output window, operand 0']
    %12 = vsyncpa [#allocation5], 0
    %s13 = scalar_lea.sflag [#allocation5], 1
    %14 = vsyncpa %s13, 0
    %15 = vsyncpa [#allocation8], 0
    %s16 = scalar_lea.sflag [#allocation8], 1
    %17 = vsyncpa %s16, 0
    %18 = vsyncpa [#allocation11], 0
    %s19 = scalar_lea.sflag [#allocation11], 1
    %20 = vsyncpa %s19, 0
    %21 = vsyncpa [#allocation14], 0
    %s22 = scalar_lea.sflag [#allocation14], 1
    %23 = vsyncpa %s22, 0
    %24 = vsyncpa [#allocation6], 0
    %s25 = scalar_lea.sflag [#allocation6], 1
    %26 = vsyncpa %s25, 0
    loop: start=0, step=1, limit=6
    $region2: #{transformer_forward.1} parent=1 // loop_pre_header
      _
    $region3: #{transformer_forward.1} parent=1 // loop_header
      %s28 = sphi 0, %s32
      %p29 = scmp.ge.s32.totalorder %s28, 6
      %s35 = sphi 0, %s47
      %s36 = sphi 0, %s43
      %s37 = sphi 0, %s35
      %s38 = sphi 0, %s36
      %s39 = sphi 0, %s37
      %s40 = sphi 0, %s38
      %s50 = sphi 0, %s52
      %s53 = sphi 0, %s50
      %s54 = sphi 0, %s53
      %s70 = sphi 0, %s54
      %s76 = sphi 0, %s78
      %s79 = sphi 0, %s76
      %s80 = sphi 0, %s79
      %s96 = sphi 0, %s80
      %s102 = sphi 0, %s104
      %s105 = sphi 0, %s102
      %s106 = sphi 0, %s105
      %s122 = sphi 0, %s106
      %s128 = sphi 0, %s130
      %s131 = sphi 0, %s128
      %s132 = sphi 0, %s131
      %s148 = sphi 0, %s132
      %s154 = sphi 0, %s156
      %s157 = sphi 0, %s154
      %s158 = sphi 0, %s157
      %s174 = sphi 0, %s158
      %s180 = sphi 0, %s182
      %s183 = sphi 0, %s180
      %s184 = sphi 0, %s183
      %s200 = sphi 0, %s184
      %s204 = sphi 0, %s204
      %s206 = sphi 0, %s204
      %s207 = sphi 0, %s206
      %s221 = sphi 0, %s207
      %s227 = sphi 0, %s229
      %s230 = sphi 0, %s227
      %s231 = sphi 0, %s230
      %s247 = sphi 0, %s231
    $region4: #{transformer_forward.1} parent=1 // loop_header_branch
      %31 = sbr.rel (%p29) target = $region8
    $region5: #{transformer_forward.1} parent=1 // loop_body
      %s33 = ssub.s32 %s28, 1
      %s34 = ssub.s32 %s28, 2
      %s41 = sadd.s32 1, %s36
      %p42 = scmp.ge.s32.totalorder %s41, 2
      %s43 = scalar_select %p42, 0, %s41
      %s44 = sadd.s32 1, %s35
      %s45 = scalar_select %p42, %s44, %s35
      %p46 = scmp.ge.s32.totalorder %s45, 2
      %s47 = scalar_select %p46, 0, %s45
      %s48 = ssub.s32 %s35, %s47
      %p49 = scmp.eq.s32.totalorder %s48, 0
      %s51 = sadd.s32 %s50, 1
      %s52 = scalar_select %p49, %s50, %s51
      %p55 = pneg %p49
      %p56 = scmp.eq.s32.totalorder %s28, 3
      %p57 = por %p55, %p56
      %p58 = scmp.ne.s32.totalorder %s50, %s53
      %p59 = scmp.eq.s32.totalorder %s28, 0
      %p60 = por %p58, %p59
      %p61 = scmp.ne.s32.totalorder %s50, %s53
      %p62 = scmp.eq.s32.totalorder %s33, 3
      %p63 = por %p61, %p62
      %p64 = scmp.ne.s32.totalorder %s53, %s54
      %p65 = scmp.eq.s32.totalorder %s33, 0
      %p66 = por %p64, %p65
      %p67 = scmp.ne.s32.totalorder %s53, %s54
      %p68 = scmp.eq.s32.totalorder %s34, 3
      %p69 = por %p67, %p68
      %p71 = scmp.ne.s32.totalorder %s54, %s70
      %p72 = scmp.eq.s32.totalorder %s34, 0
      %p73 = por %p71, %p72
      %s74 = ssub.s32 %s36, %s43
      %p75 = scmp.eq.s32.totalorder %s74, 0
      %s77 = sadd.s32 %s76, 1
      %s78 = scalar_select %p75, %s76, %s77
      %p81 = pneg %p75
      %p82 = scmp.eq.s32.totalorder %s28, 3
      %p83 = por %p81, %p82
      %p84 = scmp.ne.s32.totalorder %s76, %s79
      %p85 = scmp.eq.s32.totalorder %s28, 0
      %p86 = por %p84, %p85
      %p87 = scmp.ne.s32.totalorder %s76, %s79
      %p88 = scmp.eq.s32.totalorder %s33, 3
      %p89 = por %p87, %p88
      %p90 = scmp.ne.s32.totalorder %s79, %s80
      %p91 = scmp.eq.s32.totalorder %s33, 0
      %p92 = por %p90, %p91
      %p93 = scmp.ne.s32.totalorder %s79, %s80
      %p94 = scmp.eq.s32.totalorder %s34, 3
      %p95 = por %p93, %p94
      %p97 = scmp.ne.s32.totalorder %s80, %s96
      %p98 = scmp.eq.s32.totalorder %s34, 0
      %p99 = por %p97, %p98
      %s100 = ssub.s32 %s36, %s43
      %p101 = scmp.eq.s32.totalorder %s100, 0
      %s103 = sadd.s32 %s102, 1
      %s104 = scalar_select %p101, %s102, %s103
      %p107 = pneg %p101
      %p108 = scmp.eq.s32.totalorder %s28, 3
      %p109 = por %p107, %p108
      %p110 = scmp.ne.s32.totalorder %s102, %s105
      %p111 = scmp.eq.s32.totalorder %s28, 0
      %p112 = por %p110, %p111
      %p113 = scmp.ne.s32.totalorder %s102, %s105
      %p114 = scmp.eq.s32.totalorder %s33, 3
      %p115 = por %p113, %p114
      %p116 = scmp.ne.s32.totalorder %s105, %s106
      %p117 = scmp.eq.s32.totalorder %s33, 0
      %p118 = por %p116, %p117
      %p119 = scmp.ne.s32.totalorder %s105, %s106
      %p120 = scmp.eq.s32.totalorder %s34, 3
      %p121 = por %p119, %p120
      %p123 = scmp.ne.s32.totalorder %s106, %s122
      %p124 = scmp.eq.s32.totalorder %s34, 0
      %p125 = por %p123, %p124
      %s126 = ssub.s32 %s36, %s43
      %p127 = scmp.eq.s32.totalorder %s126, 0
      %s129 = sadd.s32 %s128, 1
      %s130 = scalar_select %p127, %s128, %s129
      %p133 = pneg %p127
      %p134 = scmp.eq.s32.totalorder %s28, 3
      %p135 = por %p133, %p134
      %p136 = scmp.ne.s32.totalorder %s128, %s131
      %p137 = scmp.eq.s32.totalorder %s28, 0
      %p138 = por %p136, %p137
      %p139 = scmp.ne.s32.totalorder %s128, %s131
      %p140 = scmp.eq.s32.totalorder %s33, 3
      %p141 = por %p139, %p140
      %p142 = scmp.ne.s32.totalorder %s131, %s132
      %p143 = scmp.eq.s32.totalorder %s33, 0
      %p144 = por %p142, %p143
      %p145 = scmp.ne.s32.totalorder %s131, %s132
      %p146 = scmp.eq.s32.totalorder %s34, 3
      %p147 = por %p145, %p146
      %p149 = scmp.ne.s32.totalorder %s132, %s148
      %p150 = scmp.eq.s32.totalorder %s34, 0
      %p151 = por %p149, %p150
      %s152 = ssub.s32 %s36, %s43
      %p153 = scmp.eq.s32.totalorder %s152, 0
      %s155 = sadd.s32 %s154, 1
      %s156 = scalar_select %p153, %s154, %s155
      %p159 = pneg %p153
      %p160 = scmp.eq.s32.totalorder %s28, 3
      %p161 = por %p159, %p160
      %p162 = scmp.ne.s32.totalorder %s154, %s157
      %p163 = scmp.eq.s32.totalorder %s28, 0
      %p164 = por %p162, %p163
      %p165 = scmp.ne.s32.totalorder %s154, %s157
      %p166 = scmp.eq.s32.totalorder %s33, 3
      %p167 = por %p165, %p166
      %p168 = scmp.ne.s32.totalorder %s157, %s158
      %p169 = scmp.eq.s32.totalorder %s33, 0
      %p170 = por %p168, %p169
      %p171 = scmp.ne.s32.totalorder %s157, %s158
      %p172 = scmp.eq.s32.totalorder %s34, 3
      %p173 = por %p171, %p172
      %p175 = scmp.ne.s32.totalorder %s158, %s174
      %p176 = scmp.eq.s32.totalorder %s34, 0
      %p177 = por %p175, %p176
      %s178 = ssub.s32 %s36, %s43
      %p179 = scmp.eq.s32.totalorder %s178, 0
      %s181 = sadd.s32 %s180, 1
      %s182 = scalar_select %p179, %s180, %s181
      %p185 = pneg %p179
      %p186 = scmp.eq.s32.totalorder %s28, 3
      %p187 = por %p185, %p186
      %p188 = scmp.ne.s32.totalorder %s180, %s183
      %p189 = scmp.eq.s32.totalorder %s28, 0
      %p190 = por %p188, %p189
      %p191 = scmp.ne.s32.totalorder %s180, %s183
      %p192 = scmp.eq.s32.totalorder %s33, 3
      %p193 = por %p191, %p192
      %p194 = scmp.ne.s32.totalorder %s183, %s184
      %p195 = scmp.eq.s32.totalorder %s33, 0
      %p196 = por %p194, %p195
      %p197 = scmp.ne.s32.totalorder %s183, %s184
      %p198 = scmp.eq.s32.totalorder %s34, 3
      %p199 = por %p197, %p198
      %p201 = scmp.ne.s32.totalorder %s184, %s200
      %p202 = scmp.eq.s32.totalorder %s34, 0
      %p203 = por %p201, %p202
      %s205 = sadd.s32 %s204, 1
      %p208 = scmp.eq.s32.totalorder %s28, 3
      %p209 = scmp.ne.s32.totalorder %s204, %s206
      %p210 = scmp.eq.s32.totalorder %s28, 0
      %p211 = por %p209, %p210
      %p212 = scmp.ne.s32.totalorder %s204, %s206
      %p213 = scmp.eq.s32.totalorder %s33, 3
      %p214 = por %p212, %p213
      %p215 = scmp.ne.s32.totalorder %s206, %s207
      %p216 = scmp.eq.s32.totalorder %s33, 0
      %p217 = por %p215, %p216
      %p218 = scmp.ne.s32.totalorder %s206, %s207
      %p219 = scmp.eq.s32.totalorder %s34, 3
      %p220 = por %p218, %p219
      %p222 = scmp.ne.s32.totalorder %s207, %s221
      %p223 = scmp.eq.s32.totalorder %s34, 0
      %p224 = por %p222, %p223
      %s225 = ssub.s32 %s35, %s47
      %p226 = scmp.eq.s32.totalorder %s225, 0
      %s228 = sadd.s32 %s227, 1
      %s229 = scalar_select %p226, %s227, %s228
      %p232 = pneg %p226
      %p233 = scmp.eq.s32.totalorder %s28, 3
      %p234 = por %p232, %p233
      %p235 = scmp.ne.s32.totalorder %s227, %s230
      %p236 = scmp.eq.s32.totalorder %s28, 0
      %p237 = por %p235, %p236
      %p238 = scmp.ne.s32.totalorder %s227, %s230
      %p239 = scmp.eq.s32.totalorder %s33, 3
      %p240 = por %p238, %p239
      %p241 = scmp.ne.s32.totalorder %s230, %s231
      %p242 = scmp.eq.s32.totalorder %s33, 0
      %p243 = por %p241, %p242
      %p244 = scmp.ne.s32.totalorder %s230, %s231
      %p245 = scmp.eq.s32.totalorder %s34, 3
      %p246 = por %p244, %p245
      %p248 = scmp.ne.s32.totalorder %s231, %s247
      %p249 = scmp.eq.s32.totalorder %s34, 0
      %p250 = por %p248, %p249
      %p251 = scmp.le.s32.totalorder 1, %s28
      %p252 = scmp.lt.s32.totalorder %s28, 5
      %p253 = pnand %p251, %p252
      %p254 = pneg %p253
      // Predicated region
      $region9: #{transformer_forward.1} parent=5 // pred_check
        _
      $region10: #{transformer_forward.1} parent=5 // pred_check_branch
        %256 = sbr.rel (%p253) target = $region12
      $region11: #{transformer_forward.1} parent=5 // pred_region
        %s257 = ssub.s32 %s28, 1
        // Predicated region
        $region13: #{transformer_forward.1} parent=11 // pred_check
          %p258 = pneg %p217
        $region14: #{transformer_forward.1} parent=11 // pred_check_branch
          %260 = sbr.rel (%p258) target = $region16
        $region15: #{transformer_forward.1} parent=11 // pred_region
          %s262 = ssub.s32 32, 32
          %263 = vsyncadd [#allocation14], %s262
          %s265 = sshll.u32 [#allocation15], 4
          %s266 = int_to_ptr.vmem [resolvable:$true] %s265
          %268 = dma.hbm_to_vmem [thread:$0]  %s6, 32, %s266, [#allocation14]
        $region16: #{transformer_forward.1} parent=11 // pred_fallthru
          _
      $region12: #{transformer_forward.1} parent=5 // pred_fallthru
        _
      %p269 = scmp.lt.s32.totalorder %s28, 4
      // Predicated region
      $region17: #{transformer_forward.1} parent=5 // pred_check
        %p270 = pneg %p269
      $region18: #{transformer_forward.1} parent=5 // pred_check_branch
        %272 = sbr.rel (%p270) target = $region20
      $region19: #{transformer_forward.1} parent=5 // pred_region
        // Predicated region
        $region21: #{transformer_forward.1} parent=19 // pred_check
          %p273 = pneg %p60
        $region22: #{transformer_forward.1} parent=19 // pred_check_branch
          %275 = sbr.rel (%p273) target = $region24
        $region23: #{transformer_forward.1} parent=19 // pred_region
          %s276 = sand.u32 %s50, 1
          %s277 = scalar_lea.sflag [#allocation5], %s276
          %s278 = sand.u32 %s50, 1
          %s279 = smul.addr %s278, 16
          %s280 = scalar_lea.vmem [#allocation4], %s279
          %s281 = smul.u32 2, %s35
          %s283 = ssub.s32 256, 256
          %284 = vsyncadd %s277, %s283
          %s285 = smul.addr %s281, 128
          %s286 = scalar_lea.hbm %s0, %s285
          %s287 = sshll.u32 %s280, 4
          %s288 = int_to_ptr.vmem [resolvable:$true] %s287
          %293 = dma.hbm_to_vmem [thread:$0]  %s286, 256, %s288, %s277, 128, 128, 8
        $region24: #{transformer_forward.1} parent=19 // pred_fallthru
          _
        // Predicated region
        $region25: #{transformer_forward.1} parent=19 // pred_check
          %p294 = pneg %p86
        $region26: #{transformer_forward.1} parent=19 // pred_check_branch
          %296 = sbr.rel (%p294) target = $region28
        $region27: #{transformer_forward.1} parent=19 // pred_region
          %s297 = sand.u32 %s28, 1
          %s298 = scalar_lea.sflag [#allocation8], %s297
          %s299 = sand.u32 %s76, 1
          %s300 = smul.addr %s299, 8
          %s301 = scalar_lea.vmem [#allocation7], %s300
          %s303 = ssub.s32 128, 128
          %304 = vsyncadd %s298, %s303
          %s305 = smul.addr %s36, 128
          %s306 = scalar_lea.hbm %s1, %s305
          %s308 = sshll.u32 %s301, 4
          %s309 = int_to_ptr.vmem [resolvable:$true] %s308
          %311 = dma.hbm_to_vmem [thread:$0]  %s306, 128, %s309, %s298
        $region28: #{transformer_forward.1} parent=19 // pred_fallthru
          _
        // Predicated region
        $region29: #{transformer_forward.1} parent=19 // pred_check
          %p312 = pneg %p112
        $region30: #{transformer_forward.1} parent=19 // pred_check_branch
          %314 = sbr.rel (%p312) target = $region32
        $region31: #{transformer_forward.1} parent=19 // pred_region
          %s315 = sand.u32 %s28, 1
          %s316 = scalar_lea.sflag [#allocation8], %s315
          %s317 = sand.u32 %s102, 1
          %s318 = smul.addr %s317, 16
          %s319 = scalar_lea.vmem [#allocation9], %s318
          %s321 = ssub.s32 256, 256
          %322 = vsyncadd %s316, %s321
          %s323 = smul.addr %s36, 4
          %s324 = smul.addr %s323, 64
          %s325 = scalar_lea.hbm %s2, %s324
          %s326 = sshll.u32 %s319, 4
          %s327 = int_to_ptr.vmem [resolvable:$true] %s326
          %332 = dma.hbm_to_vmem [thread:$0]  %s325, 256, %s327, %s316, 64, 64, 4
        $region32: #{transformer_forward.1} parent=19 // pred_fallthru
          _
        // Predicated region
        $region33: #{transformer_forward.1} parent=19 // pred_check
          %p333 = pneg %p138
        $region34: #{transformer_forward.1} parent=19 // pred_check_branch
          %335 = sbr.rel (%p333) target = $region36
        $region35: #{transformer_forward.1} parent=19 // pred_region
          %s336 = sand.u32 %s28, 1
          %s337 = scalar_lea.sflag [#allocation11], %s336
          %s338 = sand.u32 %s128, 1
          %s339 = smul.addr %s338, 16
          %s340 = scalar_lea.vmem [#allocation10], %s339
          %s342 = ssub.s32 256, 256
          %343 = vsyncadd %s337, %s342
          %s344 = smul.addr %s36, 4
          %s345 = smul.addr %s344, 64
          %s346 = scalar_lea.hbm %s3, %s345
          %s347 = sshll.u32 %s340, 4
          %s348 = int_to_ptr.vmem [resolvable:$true] %s347
          %353 = dma.hbm_to_vmem [thread:$0]  %s346, 256, %s348, %s337, 64, 64, 4
        $region36: #{transformer_forward.1} parent=19 // pred_fallthru
          _
        // Predicated region
        $region37: #{transformer_forward.1} parent=19 // pred_check
          %p354 = pneg %p164
        $region38: #{transformer_forward.1} parent=19 // pred_check_branch
          %356 = sbr.rel (%p354) target = $region40
        $region39: #{transformer_forward.1} parent=19 // pred_region
          %s357 = sand.u32 %s28, 1
          %s358 = scalar_lea.sflag [#allocation11], %s357
          %s359 = sand.u32 %s154, 1
          %s360 = smul.addr %s359, 16
          %s361 = scalar_lea.vmem [#allocation12], %s360
          %s363 = ssub.s32 256, 256
          %364 = vsyncadd %s358, %s363
          %s365 = smul.addr %s36, 4
          %s366 = smul.addr %s365, 64
          %s367 = scalar_lea.hbm %s4, %s366
          %s368 = sshll.u32 %s361, 4
          %s369 = int_to_ptr.vmem [resolvable:$true] %s368
          %374 = dma.hbm_to_vmem [thread:$0]  %s367, 256, %s369, %s358, 64, 64, 4
        $region40: #{transformer_forward.1} parent=19 // pred_fallthru
          _
        // Predicated region
        $region41: #{transformer_forward.1} parent=19 // pred_check
          %p375 = pneg %p190
        $region42: #{transformer_forward.1} parent=19 // pred_check_branch
          %377 = sbr.rel (%p375) target = $region44
        $region43: #{transformer_forward.1} parent=19 // pred_region
          %s378 = sand.u32 %s28, 1
          %s379 = scalar_lea.sflag [#allocation14], %s378
          %s380 = sand.u32 %s180, 1
          %s381 = smul.addr %s380, 32
          %s382 = scalar_lea.vmem [#allocation13], %s381
          %s384 = ssub.s32 512, 512
          %385 = vsyncadd %s379, %s384
          %s386 = smul.addr %s36, 8
          %s387 = smul.addr %s386, 64
          %s388 = scalar_lea.hbm %s5, %s387
          %s389 = sshll.u32 %s382, 4
          %s390 = int_to_ptr.vmem [resolvable:$true] %s389
          %395 = dma.hbm_to_vmem [thread:$0]  %s388, 512, %s390, %s379, 64, 64, 4
        $region44: #{transformer_forward.1} parent=19 // pred_fallthru
          _
      $region20: #{transformer_forward.1} parent=5 // pred_fallthru
        _
      %p396 = scmp.le.s32.totalorder 1, %s28
      %p397 = scmp.lt.s32.totalorder %s28, 5
      %p398 = pnand %p396, %p397
      %p399 = pneg %p398
      // Predicated region
      $region45: #{transformer_forward.1} parent=5 // pred_check
        _
      $region46: #{transformer_forward.1} parent=5 // pred_check_branch
        %401 = sbr.rel (%p398) target = $region48
      $region47: #{transformer_forward.1} parent=5 // pred_region
        %s402 = ssub.s32 %s28, 1
        %s403 = sand.u32 %s53, 1
        %s404 = scalar_lea.sflag [#allocation5], %s403
        %s405 = sand.u32 %s53, 1
        %s406 = smul.addr %s405, 16
        %s407 = scalar_lea.vmem [#allocation4], %s406
        // Predicated region
        $region49: #{transformer_forward.1} parent=47 // pred_check
          %p408 = pneg %p66
        $region50: #{transformer_forward.1} parent=47 // pred_check_branch
          %410 = sbr.rel (%p408) target = $region52
        $region51: #{transformer_forward.1} parent=47 // pred_region
          %411 = dma.done %s404, 256
        $region52: #{transformer_forward.1} parent=47 // pred_fallthru
          _
        %s412 = sand.u32 %s33, 1
        %s413 = scalar_lea.sflag [#allocation8], %s412
        %s414 = sand.u32 %s79, 1
        %s415 = smul.addr %s414, 8
        %s416 = scalar_lea.vmem [#allocation7], %s415
        // Predicated region
        $region53: #{transformer_forward.1} parent=47 // pred_check
          %p417 = pneg %p92
        $region54: #{transformer_forward.1} parent=47 // pred_check_branch
          %419 = sbr.rel (%p417) target = $region56
        $region55: #{transformer_forward.1} parent=47 // pred_region
          %420 = dma.done %s413, 128
        $region56: #{transformer_forward.1} parent=47 // pred_fallthru
          _
        %s421 = sand.u32 %s33, 1
        %s422 = scalar_lea.sflag [#allocation8], %s421
        %s423 = sand.u32 %s105, 1
        %s424 = smul.addr %s423, 16
        %s425 = scalar_lea.vmem [#allocation9], %s424
        // Predicated region
        $region57: #{transformer_forward.1} parent=47 // pred_check
          %p426 = pneg %p118
        $region58: #{transformer_forward.1} parent=47 // pred_check_branch
          %428 = sbr.rel (%p426) target = $region60
        $region59: #{transformer_forward.1} parent=47 // pred_region
          %429 = dma.done %s422, 256
        $region60: #{transformer_forward.1} parent=47 // pred_fallthru
          _
        %s430 = sand.u32 %s33, 1
        %s431 = scalar_lea.sflag [#allocation11], %s430
        %s432 = sand.u32 %s131, 1
        %s433 = smul.addr %s432, 16
        %s434 = scalar_lea.vmem [#allocation10], %s433
        // Predicated region
        $region61: #{transformer_forward.1} parent=47 // pred_check
          %p435 = pneg %p144
        $region62: #{transformer_forward.1} parent=47 // pred_check_branch
          %437 = sbr.rel (%p435) target = $region64
        $region63: #{transformer_forward.1} parent=47 // pred_region
          %438 = dma.done %s431, 256
        $region64: #{transformer_forward.1} parent=47 // pred_fallthru
          _
        %s439 = sand.u32 %s33, 1
        %s440 = scalar_lea.sflag [#allocation11], %s439
        %s441 = sand.u32 %s157, 1
        %s442 = smul.addr %s441, 16
        %s443 = scalar_lea.vmem [#allocation12], %s442
        // Predicated region
        $region65: #{transformer_forward.1} parent=47 // pred_check
          %p444 = pneg %p170
        $region66: #{transformer_forward.1} parent=47 // pred_check_branch
          %446 = sbr.rel (%p444) target = $region68
        $region67: #{transformer_forward.1} parent=47 // pred_region
          %447 = dma.done %s440, 256
        $region68: #{transformer_forward.1} parent=47 // pred_fallthru
          _
        %s448 = sand.u32 %s33, 1
        %s449 = scalar_lea.sflag [#allocation14], %s448
        %s450 = sand.u32 %s183, 1
        %s451 = smul.addr %s450, 32
        %s452 = scalar_lea.vmem [#allocation13], %s451
        // Predicated region
        $region69: #{transformer_forward.1} parent=47 // pred_check
          %p453 = pneg %p196
        $region70: #{transformer_forward.1} parent=47 // pred_check_branch
          %455 = sbr.rel (%p453) target = $region72
        $region71: #{transformer_forward.1} parent=47 // pred_region
          %456 = dma.done %s449, 512
        $region72: #{transformer_forward.1} parent=47 // pred_fallthru
          _
        // Predicated region
        $region73: #{transformer_forward.1} parent=47 // pred_check
          %p457 = pneg %p217
        $region74: #{transformer_forward.1} parent=47 // pred_check_branch
          %459 = sbr.rel (%p457) target = $region76
        $region75: #{transformer_forward.1} parent=47 // pred_region
          %460 = dma.done [#allocation14], 32
        $region76: #{transformer_forward.1} parent=47 // pred_fallthru
          _
        %s461 = sand.u32 %s53, 1
        %s462 = scalar_lea.sflag [#allocation5], %s461
        %s463 = sand.u32 %s53, 1
        %s464 = smul.addr %s463, 16
        %s465 = scalar_lea.vmem [#allocation4], %s464
        %p466 = pneg %p66
        %p467 = pneg %p63
        %s468 = sand.u32 %s33, 1
        %s469 = scalar_lea.sflag [#allocation8], %s468
        %s470 = sand.u32 %s79, 1
        %s471 = smul.addr %s470, 8
        %s472 = scalar_lea.vmem [#allocation7], %s471
        %p473 = pneg %p92
        %p474 = pneg %p89
        %s475 = sand.u32 %s33, 1
        %s476 = scalar_lea.sflag [#allocation8], %s475
        %s477 = sand.u32 %s105, 1
        %s478 = smul.addr %s477, 16
        %s479 = scalar_lea.vmem [#allocation9], %s478
        %p480 = pneg %p118
        %p481 = pneg %p115
        %s482 = sand.u32 %s33, 1
        %s483 = scalar_lea.sflag [#allocation11], %s482
        %s484 = sand.u32 %s131, 1
        %s485 = smul.addr %s484, 16
        %s486 = scalar_lea.vmem [#allocation10], %s485
        %p487 = pneg %p144
        %p488 = pneg %p141
        %s489 = sand.u32 %s33, 1
        %s490 = scalar_lea.sflag [#allocation11], %s489
        %s491 = sand.u32 %s157, 1
        %s492 = smul.addr %s491, 16
        %s493 = scalar_lea.vmem [#allocation12], %s492
        %p494 = pneg %p170
        %p495 = pneg %p167
        %s496 = sand.u32 %s33, 1
        %s497 = scalar_lea.sflag [#allocation14], %s496
        %s498 = sand.u32 %s183, 1
        %s499 = smul.addr %s498, 32
        %s500 = scalar_lea.vmem [#allocation13], %s499
        %p501 = pneg %p196
        %p502 = pneg %p193
        %p503 = pneg %p217
        %p504 = pneg %p214
        %p505 = pneg %p243
        %p506 = pneg %p240
        %s507 = sand.u32 %s230, 1
        %s508 = scalar_lea.sflag [#allocation6], %s507
        %s509 = sand.u32 %s230, 1
        %s510 = smul.addr %s509, 16
        %s511 = scalar_lea.vmem [#allocation16], %s510
        %s512 = smul.u32 2, %s37
        %s513 = smul.u32 2, %s37
        %p515 = scmp.eq.s32.totalorder %s38, 0
        // Predicated region
        $region77: #{transformer_forward.1} parent=47 // pred_check
          %p516 = pneg %p515
        $region78: #{transformer_forward.1} parent=47 // pred_check_branch
          %518 = sbr.rel (%p516) target = $region80
        $region79: #{transformer_forward.1} parent=47 // pred_region
          %v519 = vld [vmem:[%s407] sm:$0xff]
          %vm520 = vcmask 261120
          %521 = vst.msk [vmem:[#allocation2] sm:$0xff] %vm520, %v519
          %s522 = scalar_lea.vmem %s407, 8 [#allocation4]
          %v523 = vld [vmem:[%s522] sm:$0xff]
          %524 = vst.msk [vmem:[#allocation2 + $0x8] sm:$0xff] %vm520, %v523
        $region80: #{transformer_forward.1} parent=47 // pred_fallthru
          _
        %v525 = vld [vmem:[#allocation2] sm:$0xff]
        %v526 = vld [vmem:[#allocation2 + $0x8] sm:$0xff]
        %v527 = vld [vmem:[%s416] sm:$0x7f]
        %vm528 = vcmask 261120
        %v529 = vsel %vm528, %v525, 0.0
        %530 = vadd.xlane.f32.xlu0 %v529
        %v531 = vpop.xlane.xlu0 %530
        %v532 = vsel %vm528, %v526, 0.0
        %533 = vadd.xlane.f32.xlu0 %v532
        %v534 = vpop.xlane.xlu0 %533
        %v535 = vrcp.pop 32.0
        %v536 = vmul.f32 %v531, %v535
        %v537 = vmul.f32 %v534, %v535
        %v538 = vsub.f32 %v525, %v536
        %v539 = vsub.f32 %v526, %v537
        %v540 = vmul.f32 %v538, %v538
        %v541 = vmul.f32 %v539, %v539
        %v542 = vsel %vm528, %v540, 0.0
        %543 = vadd.xlane.f32.xlu0 %v542
        %v544 = vpop.xlane.xlu0 %543
        %v545 = vsel %vm528, %v541, 0.0
        %546 = vadd.xlane.f32.xlu0 %v545
        %v547 = vpop.xlane.xlu0 %546
        %v548 = vmul.f32 %v544, %v535
        %v549 = vmul.f32 %v547, %v535
        %v550 = vadd.f32 %v548, 1e-05
        %v551 = vadd.f32 %v549, 1e-05
        %v552 = vrsqrt.pop %v550
        %v553 = vrsqrt.pop %v551
        %v554 = vmul.f32 %v538, %v552
        %v555 = vmul.f32 %v539, %v553
        %v556 = vlaneseq
        %v557 = vshrl.u32 %v556, 7
        %v558 = vsub.s32 0, %v557
        %v559 = vrot.slane %v527, %v558
        %v560 = vmul.f32 %v554, %v559
        %v561 = vmul.f32 %v555, %v559
        %v562 = vlaneseq
        %v563 = vshrl.u32 %v562, 7
        %v564 = vsub.s32 1, %v563
        %v565 = vrot.slane %v527, %v564
        %v566 = vadd.f32 %v560, %v565
        %v567 = vadd.f32 %v561, %v565
        %v568 = vpack.c.bf16 %v567, %v566
        %v569 = vld [vmem:[%s425] sm:$0xf]
        %v570 = vld [vmem:[%s425 + $0x4] sm:$0xf]
        %v571 = vld [vmem:[%s425 + $0x8] sm:$0xf]
        %v572 = vld [vmem:[%s425 + $0xc] sm:$0xf]
        %v577 = vunpack.c.l.b16 %v569
        %v578 = vunpack.c.l.b16 %v570
        %v579 = vunpack.c.l.b16 %v571
        %v580 = vunpack.c.l.b16 %v572
        %v581 = vpack.c.b16 %v578, %v577
        %v582 = vpack.c.b16 %v580, %v579
        %v586 = vsel %vm528, %v568, 0
        %588 = vmatprep.subr.bf16.mxu0 0
        %589 = vmatpush1.bf16.msra.mxu0 %v581
        %590 = vmatprep.subr.bf16.mxu0 0
        %591 = vmatpush1.bf16.msra.mxu0 %v582
        %592 = vmatprep.subr.bf16.mxu0 0
        %593 = vmatpush1.bf16.msra.mxu0 0
        %594 = vmatprep.subr.bf16.mxu0 0
        %595 = vmatpush1.bf16.msra.mxu0 0
        %596 = vmatprep.subr.bf16.mxu0 0
        %597 = vmatpush1.bf16.msra.mxu0 0
        %598 = vmatprep.subr.bf16.mxu0 0
        %599 = vmatpush1.bf16.msra.mxu0 0
        %600 = vmatprep.subr.bf16.mxu0 0
        %601 = vmatpush1.bf16.msra.mxu0 0
        %602 = vmatprep.subr.bf16.mxu0 0
        %603 = vmatpush1.bf16.msra.mxu0 0
        %604 = vmatprep.subr.bf16.mxu0 0
        %605 = vmatpush1.bf16.msra.mxu0 0
        %606 = vmatprep.subr.bf16.mxu0 0
        %607 = vmatpush1.bf16.msra.mxu0 0
        %608 = vmatprep.subr.bf16.mxu0 0
        %609 = vmatpush1.bf16.msra.mxu0 0
        %610 = vmatprep.subr.bf16.mxu0 0
        %611 = vmatpush1.bf16.msra.mxu0 0
        %612 = vmatprep.subr.bf16.mxu0 0
        %613 = vmatpush1.bf16.msra.mxu0 0
        %614 = vmatprep.subr.bf16.mxu0 0
        %615 = vmatpush1.bf16.msra.mxu0 0
        %616 = vmatprep.subr.bf16.mxu0 0
        %617 = vmatpush1.bf16.msra.mxu0 0
        %618 = vmatprep.subr.bf16.mxu0 0
        %619 = vmatpush1.bf16.msra.mxu0 0
        %620 = vmatprep.mubr.bf16.mxu0 0
        %621 = vmatmul.mubr.bf16.gmra.mrb[0].mxu0 %v586
        %v622 = vpop.f32.mrb[0].mxu0
        %v623 = vadd.f32 0.0, %v622
        %v624 = vpop.f32.mrb[0].mxu0
        %v625 = vpop.f32.mrb[0].mxu0
        %v626 = vadd.f32 0.0, %v625
        %v627 = vpop.f32.mrb[0].mxu0
        %628 = vdwg.mxu0
        %v629 = vpack.c.bf16 %v623, %v623
        %631 = vrot.lane.b32.xlu0 %v629, 96
        %v632 = vpop.permute.xlu0 %631
        %vm633 = vcmask 64512
        %v635 = vsel %vm633, %v629, 0
        %v638 = vsel %vm633, %v632, 0
        %640 = vmatprep.subr.bf16.mxu0 0
        %641 = vmatpush1.bf16.xpose.msra.mxu0 %v638
        %642 = vmatprep.subr.bf16.mxu0 0
        %643 = vmatpush1.bf16.xpose.msra.mxu0 0
        %644 = vmatprep.subr.bf16.mxu0 0
        %645 = vmatpush1.bf16.xpose.msra.mxu0 0
        %646 = vmatprep.subr.bf16.mxu0 0
        %647 = vmatpush1.bf16.xpose.msra.mxu0 0
        %648 = vmatprep.subr.bf16.mxu0 0
        %649 = vmatpush1.bf16.xpose.msra.mxu0 0
        %650 = vmatprep.subr.bf16.mxu0 0
        %651 = vmatpush1.bf16.xpose.msra.mxu0 0
        %652 = vmatprep.subr.bf16.mxu0 0
        %653 = vmatpush1.bf16.xpose.msra.mxu0 0
        %654 = vmatprep.subr.bf16.mxu0 0
        %655 = vmatpush1.bf16.xpose.msra.mxu0 0
        %656 = vmatprep.subr.bf16.mxu0 0
        %657 = vmatpush1.bf16.xpose.msra.mxu0 0
        %658 = vmatprep.subr.bf16.mxu0 0
        %659 = vmatpush1.bf16.xpose.msra.mxu0 0
        %660 = vmatprep.subr.bf16.mxu0 0
        %661 = vmatpush1.bf16.xpose.msra.mxu0 0
        %662 = vmatprep.subr.bf16.mxu0 0
        %663 = vmatpush1.bf16.xpose.msra.mxu0 0
        %664 = vmatprep.subr.bf16.mxu0 0
        %665 = vmatpush1.bf16.xpose.msra.mxu0 0
        %666 = vmatprep.subr.bf16.mxu0 0
        %667 = vmatpush1.bf16.xpose.msra.mxu0 0
        %668 = vmatprep.subr.bf16.mxu0 0
        %669 = vmatpush1.bf16.xpose.msra.mxu0 0
        %670 = vmatprep.subr.bf16.mxu0 0
        %671 = vmatpush1.bf16.xpose.msra.mxu0 0
        %672 = vmatprep.mubr.bf16.mxu0 0
        %673 = vmatmul.mubr.bf16.gmra.mrb[0].mxu0 %v635
        %v674 = vpop.f32.mrb[0].mxu0
        %v675 = vadd.f32 0.0, %v674
        %v676 = vpop.f32.mrb[0].mxu0
        %v677 = vpop.f32.mrb[0].mxu0
        %v678 = vpop.f32.mrb[0].mxu0
        %679 = vdwg.mxu0
        %v680 = vsel %vm633, %v675, -inf
        %681 = vmax.xlane.f32.xlu0 %v680
        %v682 = vpop.xlane.xlu0 %681
        %v683 = vsub.f32 %v675, %v682
        %v684 = vmul.f32 %v683, 1.442695
        %v685 = vpow.pop %v684
        %v686 = vsel %vm633, %v685, 0.0
        %687 = vadd.xlane.f32.xlu0 %v686
        %v688 = vpop.xlane.xlu0 %687
        %v689 = vrcp.pop %v688
        %v690 = vmul.f32 %v685, %v689
        %v691 = vpack.c.bf16 %v690, %v690
        %692 = vrot.lane.b32.xlu0 %v629, 64
        %v693 = vpop.permute.xlu0 %692
        %v695 = vsel %vm633, %v691, 0
        %vm697 = vcmask 1043456
        %v699 = vsel %vm697, %v693, 0
        %701 = vmatprep.subr.bf16.mxu0 0
        %702 = vmatpush1.bf16.msra.mxu0 %v699
        %703 = vmatprep.subr.bf16.mxu0 0
        %704 = vmatpush1.bf16.msra.mxu0 0
        %705 = vmatprep.subr.bf16.mxu0 0
        %706 = vmatpush1.bf16.msra.mxu0 0
        %707 = vmatprep.subr.bf16.mxu0 0
        %708 = vmatpush1.bf16.msra.mxu0 0
        %709 = vmatprep.subr.bf16.mxu0 0
        %710 = vmatpush1.bf16.msra.mxu0 0
        %711 = vmatprep.subr.bf16.mxu0 0
        %712 = vmatpush1.bf16.msra.mxu0 0
        %713 = vmatprep.subr.bf16.mxu0 0
        %714 = vmatpush1.bf16.msra.mxu0 0
        %715 = vmatprep.subr.bf16.mxu0 0
        %716 = vmatpush1.bf16.msra.mxu0 0
        %717 = vmatprep.subr.bf16.mxu0 0
        %718 = vmatpush1.bf16.msra.mxu0 0
        %719 = vmatprep.subr.bf16.mxu0 0
        %720 = vmatpush1.bf16.msra.mxu0 0
        %721 = vmatprep.subr.bf16.mxu0 0
        %722 = vmatpush1.bf16.msra.mxu0 0
        %723 = vmatprep.subr.bf16.mxu0 0
        %724 = vmatpush1.bf16.msra.mxu0 0
        %725 = vmatprep.subr.bf16.mxu0 0
        %726 = vmatpush1.bf16.msra.mxu0 0
        %727 = vmatprep.subr.bf16.mxu0 0
        %728 = vmatpush1.bf16.msra.mxu0 0
        %729 = vmatprep.subr.bf16.mxu0 0
        %730 = vmatpush1.bf16.msra.mxu0 0
        %731 = vmatprep.subr.bf16.mxu0 0
        %732 = vmatpush1.bf16.msra.mxu0 0
        %733 = vmatprep.mubr.bf16.mxu0 0
        %734 = vmatmul.mubr.bf16.gmra.mrb[0].mxu0 %v695
        %v735 = vpop.f32.mrb[0].mxu0
        %v736 = vadd.f32 0.0, %v735
        %v737 = vpop.f32.mrb[0].mxu0
        %v738 = vpop.f32.mrb[0].mxu0
        %v739 = vpop.f32.mrb[0].mxu0
        %740 = vdwg.mxu0
        %v741 = vpack.c.bf16 %v736, %v736
        %vm742 = vcmask 60416
        %743 = vst.msk [vmem:[#allocation3] sm:$0xf] %vm742, %v741
        %744 = vrot.lane.b32.xlu0 %v629, 120
        %v745 = vpop.permute.xlu0 %744
        %746 = vrot.lane.b32.xlu0 %v629, 88
        %v747 = vpop.permute.xlu0 %746
        %v749 = vsel %vm633, %v745, 0
        %v752 = vsel %vm633, %v747, 0
        %754 = vmatprep.subr.bf16.mxu0 0
        %755 = vmatpush1.bf16.xpose.msra.mxu0 %v752
        %756 = vmatprep.subr.bf16.mxu0 0
        %757 = vmatpush1.bf16.xpose.msra.mxu0 0
        %758 = vmatprep.subr.bf16.mxu0 0
        %759 = vmatpush1.bf16.xpose.msra.mxu0 0
        %760 = vmatprep.subr.bf16.mxu0 0
        %761 = vmatpush1.bf16.xpose.msra.mxu0 0
        %762 = vmatprep.subr.bf16.mxu0 0
        %763 = vmatpush1.bf16.xpose.msra.mxu0 0
        %764 = vmatprep.subr.bf16.mxu0 0
        %765 = vmatpush1.bf16.xpose.msra.mxu0 0
        %766 = vmatprep.subr.bf16.mxu0 0
        %767 = vmatpush1.bf16.xpose.msra.mxu0 0
        %768 = vmatprep.subr.bf16.mxu0 0
        %769 = vmatpush1.bf16.xpose.msra.mxu0 0
        %770 = vmatprep.subr.bf16.mxu0 0
        %771 = vmatpush1.bf16.xpose.msra.mxu0 0
        %772 = vmatprep.subr.bf16.mxu0 0
        %773 = vmatpush1.bf16.xpose.msra.mxu0 0
        %774 = vmatprep.subr.bf16.mxu0 0
        %775 = vmatpush1.bf16.xpose.msra.mxu0 0
        %776 = vmatprep.subr.bf16.mxu0 0
        %777 = vmatpush1.bf16.xpose.msra.mxu0 0
        %778 = vmatprep.subr.bf16.mxu0 0
        %779 = vmatpush1.bf16.xpose.msra.mxu0 0
        %780 = vmatprep.subr.bf16.mxu0 0
        %781 = vmatpush1.bf16.xpose.msra.mxu0 0
        %782 = vmatprep.subr.bf16.mxu0 0
        %783 = vmatpush1.bf16.xpose.msra.mxu0 0
        %784 = vmatprep.subr.bf16.mxu0 0
        %785 = vmatpush1.bf16.xpose.msra.mxu0 0
        %786 = vmatprep.mubr.bf16.mxu0 0
        %787 = vmatmul.mubr.bf16.gmra.mrb[0].mxu0 %v749
        %v788 = vpop.f32.mrb[0].mxu0
        %v789 = vadd.f32 0.0, %v788
        %v790 = vpop.f32.mrb[0].mxu0
        %v791 = vpop.f32.mrb[0].mxu0
        %v792 = vpop.f32.mrb[0].mxu0
        %793 = vdwg.mxu0
        %v794 = vsel %vm633, %v789, -inf
        %795 = vmax.xlane.f32.xlu0 %v794
        %v796 = vpop.xlane.xlu0 %795
        %v797 = vsub.f32 %v789, %v796
        %v798 = vmul.f32 %v797, 1.442695
        %v799 = vpow.pop %v798
        %v800 = vsel %vm633, %v799, 0.0
        %801 = vadd.xlane.f32.xlu0 %v800
        %v802 = vpop.xlane.xlu0 %801
        %v803 = vrcp.pop %v802
        %v804 = vmul.f32 %v799, %v803
        %v805 = vpack.c.bf16 %v804, %v804
        %806 = vrot.lane.b32.xlu0 %v629, 56
        %v807 = vpop.permute.xlu0 %806
        %v809 = vsel %vm633, %v805, 0
        %v812 = vsel %vm697, %v807, 0
        %814 = vmatprep.subr.bf16.mxu0 0
        %815 = vmatpush1.bf16.msra.mxu0 %v812
        %816 = vmatprep.subr.bf16.mxu0 0
        %817 = vmatpush1.bf16.msra.mxu0 0
        %818 = vmatprep.subr.bf16.mxu0 0
        %819 = vmatpush1.bf16.msra.mxu0 0
        %820 = vmatprep.subr.bf16.mxu0 0
        %821 = vmatpush1.bf16.msra.mxu0 0
        %822 = vmatprep.subr.bf16.mxu0 0
        %823 = vmatpush1.bf16.msra.mxu0 0
        %824 = vmatprep.subr.bf16.mxu0 0
        %825 = vmatpush1.bf16.msra.mxu0 0
        %826 = vmatprep.subr.bf16.mxu0 0
        %827 = vmatpush1.bf16.msra.mxu0 0
        %828 = vmatprep.subr.bf16.mxu0 0
        %829 = vmatpush1.bf16.msra.mxu0 0
        %830 = vmatprep.subr.bf16.mxu0 0
        %831 = vmatpush1.bf16.msra.mxu0 0
        %832 = vmatprep.subr.bf16.mxu0 0
        %833 = vmatpush1.bf16.msra.mxu0 0
        %834 = vmatprep.subr.bf16.mxu0 0
        %835 = vmatpush1.bf16.msra.mxu0 0
        %836 = vmatprep.subr.bf16.mxu0 0
        %837 = vmatpush1.bf16.msra.mxu0 0
        %838 = vmatprep.subr.bf16.mxu0 0
        %839 = vmatpush1.bf16.msra.mxu0 0
        %840 = vmatprep.subr.bf16.mxu0 0
        %841 = vmatpush1.bf16.msra.mxu0 0
        %842 = vmatprep.subr.bf16.mxu0 0
        %843 = vmatpush1.bf16.msra.mxu0 0
        %844 = vmatprep.subr.bf16.mxu0 0
        %845 = vmatpush1.bf16.msra.mxu0 0
        %846 = vmatprep.mubr.bf16.mxu0 0
        %847 = vmatmul.mubr.bf16.gmra.mrb[0].mxu0 %v809
        %v848 = vpop.f32.mrb[0].mxu0
        %v849 = vadd.f32 0.0, %v848
        %v850 = vpop.f32.mrb[0].mxu0
        %v851 = vpop.f32.mrb[0].mxu0
        %v852 = vpop.f32.mrb[0].mxu0
        %853 = vdwg.mxu0
        %v854 = vpack.c.bf16 %v849, %v849
        %856 = vrot.lane.b32.xlu0 %v854, 8
        %v857 = vpop.permute.xlu0 %856
        %vm859 = vcmask 126016
        %860 = vst.msk [vmem:[#allocation3] sm:$0xf] %vm859, %v857
        %861 = vrot.lane.b32.xlu0 %v629, 112
        %v862 = vpop.permute.xlu0 %861
        %863 = vrot.lane.b32.xlu0 %v629, 80
        %v864 = vpop.permute.xlu0 %863
        %v866 = vsel %vm633, %v862, 0
        %v869 = vsel %vm633, %v864, 0
        %871 = vmatprep.subr.bf16.mxu0 0
        %872 = vmatpush1.bf16.xpose.msra.mxu0 %v869
        %873 = vmatprep.subr.bf16.mxu0 0
        %874 = vmatpush1.bf16.xpose.msra.mxu0 0
        %875 = vmatprep.subr.bf16.mxu0 0
        %876 = vmatpush1.bf16.xpose.msra.mxu0 0
        %877 = vmatprep.subr.bf16.mxu0 0
        %878 = vmatpush1.bf16.xpose.msra.mxu0 0
        %879 = vmatprep.subr.bf16.mxu0 0
        %880 = vmatpush1.bf16.xpose.msra.mxu0 0
        %881 = vmatprep.subr.bf16.mxu0 0
        %882 = vmatpush1.bf16.xpose.msra.mxu0 0
        %883 = vmatprep.subr.bf16.mxu0 0
        %884 = vmatpush1.bf16.xpose.msra.mxu0 0
        %885 = vmatprep.subr.bf16.mxu0 0
        %886 = vmatpush1.bf16.xpose.msra.mxu0 0
        %887 = vmatprep.subr.bf16.mxu0 0
        %888 = vmatpush1.bf16.xpose.msra.mxu0 0
        %889 = vmatprep.subr.bf16.mxu0 0
        %890 = vmatpush1.bf16.xpose.msra.mxu0 0
        %891 = vmatprep.subr.bf16.mxu0 0
        %892 = vmatpush1.bf16.xpose.msra.mxu0 0
        %893 = vmatprep.subr.bf16.mxu0 0
        %894 = vmatpush1.bf16.xpose.msra.mxu0 0
        %895 = vmatprep.subr.bf16.mxu0 0
        %896 = vmatpush1.bf16.xpose.msra.mxu0 0
        %897 = vmatprep.subr.bf16.mxu0 0
        %898 = vmatpush1.bf16.xpose.msra.mxu0 0
        %899 = vmatprep.subr.bf16.mxu0 0
        %900 = vmatpush1.bf16.xpose.msra.mxu0 0
        %901 = vmatprep.subr.bf16.mxu0 0
        %902 = vmatpush1.bf16.xpose.msra.mxu0 0
        %903 = vmatprep.mubr.bf16.mxu0 0
        %904 = vmatmul.mubr.bf16.gmra.mrb[0].mxu0 %v866
        %v905 = vpop.f32.mrb[0].mxu0
        %v906 = vadd.f32 0.0, %v905
        %v907 = vpop.f32.mrb[0].mxu0
        %v908 = vpop.f32.mrb[0].mxu0
        %v909 = vpop.f32.mrb[0].mxu0
        %910 = vdwg.mxu0
        %v911 = vsel %vm633, %v906, -inf
        %912 = vmax.xlane.f32.xlu0 %v911
        %v913 = vpop.xlane.xlu0 %912
        %v914 = vsub.f32 %v906, %v913
        %v915 = vmul.f32 %v914, 1.442695
        %v916 = vpow.pop %v915
        %v917 = vsel %vm633, %v916, 0.0
        %918 = vadd.xlane.f32.xlu0 %v917
        %v919 = vpop.xlane.xlu0 %918
        %v920 = vrcp.pop %v919
        %v921 = vmul.f32 %v916, %v920
        %v922 = vpack.c.bf16 %v921, %v921
        %923 = vrot.lane.b32.xlu0 %v629, 48
        %v924 = vpop.permute.xlu0 %923
        %v926 = vsel %vm633, %v922, 0
        %v929 = vsel %vm697, %v924, 0
        %931 = vmatprep.subr.bf16.mxu0 0
        %932 = vmatpush1.bf16.msra.mxu0 %v929
        %933 = vmatprep.subr.bf16.mxu0 0
        %934 = vmatpush1.bf16.msra.mxu0 0
        %935 = vmatprep.subr.bf16.mxu0 0
        %936 = vmatpush1.bf16.msra.mxu0 0
        %937 = vmatprep.subr.bf16.mxu0 0
        %938 = vmatpush1.bf16.msra.mxu0 0
        %939 = vmatprep.subr.bf16.mxu0 0
        %940 = vmatpush1.bf16.msra.mxu0 0
        %941 = vmatprep.subr.bf16.mxu0 0
        %942 = vmatpush1.bf16.msra.mxu0 0
        %943 = vmatprep.subr.bf16.mxu0 0
        %944 = vmatpush1.bf16.msra.mxu0 0
        %945 = vmatprep.subr.bf16.mxu0 0
        %946 = vmatpush1.bf16.msra.mxu0 0
        %947 = vmatprep.subr.bf16.mxu0 0
        %948 = vmatpush1.bf16.msra.mxu0 0
        %949 = vmatprep.subr.bf16.mxu0 0
        %950 = vmatpush1.bf16.msra.mxu0 0
        %951 = vmatprep.subr.bf16.mxu0 0
        %952 = vmatpush1.bf16.msra.mxu0 0
        %953 = vmatprep.subr.bf16.mxu0 0
        %954 = vmatpush1.bf16.msra.mxu0 0
        %955 = vmatprep.subr.bf16.mxu0 0
        %956 = vmatpush1.bf16.msra.mxu0 0
        %957 = vmatprep.subr.bf16.mxu0 0
        %958 = vmatpush1.bf16.msra.mxu0 0
        %959 = vmatprep.subr.bf16.mxu0 0
        %960 = vmatpush1.bf16.msra.mxu0 0
        %961 = vmatprep.subr.bf16.mxu0 0
        %962 = vmatpush1.bf16.msra.mxu0 0
        %963 = vmatprep.mubr.bf16.mxu0 0
        %964 = vmatmul.mubr.bf16.gmra.mrb[0].mxu0 %v926
        %v965 = vpop.f32.mrb[0].mxu0
        %v966 = vadd.f32 0.0, %v965
        %v967 = vpop.f32.mrb[0].mxu0
        %v968 = vpop.f32.mrb[0].mxu0
        %v969 = vpop.f32.mrb[0].mxu0
        %970 = vdwg.mxu0
        %v971 = vpack.c.bf16 %v966, %v966
        %973 = vrot.lane.b32.xlu0 %v971, 16
        %v974 = vpop.permute.xlu0 %973
        %vm976 = vcmask 191616
        %977 = vst.msk [vmem:[#allocation3] sm:$0xf] %vm976, %v974
        %978 = vrot.lane.b32.xlu0 %v629, 104
        %v979 = vpop.permute.xlu0 %978
        %980 = vrot.lane.b32.xlu0 %v629, 72
        %v981 = vpop.permute.xlu0 %980
        %v983 = vsel %vm633, %v979, 0
        %v986 = vsel %vm633, %v981, 0
        %988 = vmatprep.subr.bf16.mxu0 0
        %989 = vmatpush1.bf16.xpose.msra.mxu0 %v986
        %990 = vmatprep.subr.bf16.mxu0 0
        %991 = vmatpush1.bf16.xpose.msra.mxu0 0
        %992 = vmatprep.subr.bf16.mxu0 0
        %993 = vmatpush1.bf16.xpose.msra.mxu0 0
        %994 = vmatprep.subr.bf16.mxu0 0
        %995 = vmatpush1.bf16.xpose.msra.mxu0 0
        %996 = vmatprep.subr.bf16.mxu0 0
        %997 = vmatpush1.bf16.xpose.msra.mxu0 0
        %998 = vmatprep.subr.bf16.mxu0 0
        %999 = vmatpush1.bf16.xpose.msra.mxu0 0
        %1000 = vmatprep.subr.bf16.mxu0 0
        %1001 = vmatpush1.bf16.xpose.msra.mxu0 0
        %1002 = vmatprep.subr.bf16.mxu0 0
        %1003 = vmatpush1.bf16.xpose.msra.mxu0 0
        %1004 = vmatprep.subr.bf16.mxu0 0
        %1005 = vmatpush1.bf16.xpose.msra.mxu0 0
        %1006 = vmatprep.subr.bf16.mxu0 0
        %1007 = vmatpush1.bf16.xpose.msra.mxu0 0
        %1008 = vmatprep.subr.bf16.mxu0 0
        %1009 = vmatpush1.bf16.xpose.msra.mxu0 0
        %1010 = vmatprep.subr.bf16.mxu0 0
        %1011 = vmatpush1.bf16.xpose.msra.mxu0 0
        %1012 = vmatprep.subr.bf16.mxu0 0
        %1013 = vmatpush1.bf16.xpose.msra.mxu0 0
        %1014 = vmatprep.subr.bf16.mxu0 0
        %1015 = vmatpush1.bf16.xpose.msra.mxu0 0
        %1016 = vmatprep.subr.bf16.mxu0 0
        %1017 = vmatpush1.bf16.xpose.msra.mxu0 0
        %1018 = vmatprep.subr.bf16.mxu0 0
        %1019 = vmatpush1.bf16.xpose.msra.mxu0 0
        %1020 = vmatprep.mubr.bf16.mxu0 0
        %1021 = vmatmul.mubr.bf16.gmra.mrb[0].mxu0 %v983
        %v1022 = vpop.f32.mrb[0].mxu0
        %v1023 = vadd.f32 0.0, %v1022
        %v1024 = vpop.f32.mrb[0].mxu0
        %v1025 = vpop.f32.mrb[0].mxu0
        %v1026 = vpop.f32.mrb[0].mxu0
        %1027 = vdwg.mxu0
        %v1028 = vsel %vm633, %v1023, -inf
        %1029 = vmax.xlane.f32.xlu0 %v1028
        %v1030 = vpop.xlane.xlu0 %1029
        %v1031 = vsub.f32 %v1023, %v1030
        %v1032 = vmul.f32 %v1031, 1.442695
        %v1033 = vpow.pop %v1032
        %v1034 = vsel %vm633, %v1033, 0.0
        %1035 = vadd.xlane.f32.xlu0 %v1034
        %v1036 = vpop.xlane.xlu0 %1035
        %v1037 = vrcp.pop %v1036
        %v1038 = vmul.f32 %v1033, %v1037
        %v1039 = vpack.c.bf16 %v1038, %v1038
        %1040 = vrot.lane.b32.xlu0 %v629, 40
        %v1041 = vpop.permute.xlu0 %1040
        %v1043 = vsel %vm633, %v1039, 0
        %v1046 = vsel %vm697, %v1041, 0
        %1048 = vmatprep.subr.bf16.mxu0 0
        %1049 = vmatpush1.bf16.msra.mxu0 %v1046
        %1050 = vmatprep.subr.bf16.mxu0 0
        %1051 = vmatpush1.bf16.msra.mxu0 0
        %1052 = vmatprep.subr.bf16.mxu0 0
        %1053 = vmatpush1.bf16.msra.mxu0 0
        %1054 = vmatprep.subr.bf16.mxu0 0
        %1055 = vmatpush1.bf16.msra.mxu0 0
        %1056 = vmatprep.subr.bf16.mxu0 0
        %1057 = vmatpush1.bf16.msra.mxu0 0
        %1058 = vmatprep.subr.bf16.mxu0 0
        %1059 = vmatpush1.bf16.msra.mxu0 0
        %1060 = vmatprep.subr.bf16.mxu0 0
        %1061 = vmatpush1.bf16.msra.mxu0 0
        %1062 = vmatprep.subr.bf16.mxu0 0
        %1063 = vmatpush1.bf16.msra.mxu0 0
        %1064 = vmatprep.subr.bf16.mxu0 0
        %1065 = vmatpush1.bf16.msra.mxu0 0
        %1066 = vmatprep.subr.bf16.mxu0 0
        %1067 = vmatpush1.bf16.msra.mxu0 0
        %1068 = vmatprep.subr.bf16.mxu0 0
        %1069 = vmatpush1.bf16.msra.mxu0 0
        %1070 = vmatprep.subr.bf16.mxu0 0
        %1071 = vmatpush1.bf16.msra.mxu0 0
        %1072 = vmatprep.subr.bf16.mxu0 0
        %1073 = vmatpush1.bf16.msra.mxu0 0
        %1074 = vmatprep.subr.bf16.mxu0 0
        %1075 = vmatpush1.bf16.msra.mxu0 0
        %1076 = vmatprep.subr.bf16.mxu0 0
        %1077 = vmatpush1.bf16.msra.mxu0 0
        %1078 = vmatprep.subr.bf16.mxu0 0
        %1079 = vmatpush1.bf16.msra.mxu0 0
        %1080 = vmatprep.mubr.bf16.mxu0 0
        %1081 = vmatmul.mubr.bf16.gmra.mrb[0].mxu0 %v1043
        %v1082 = vpop.f32.mrb[0].mxu0
        %v1083 = vadd.f32 0.0, %v1082
        %v1084 = vpop.f32.mrb[0].mxu0
        %v1085 = vpop.f32.mrb[0].mxu0
        %v1086 = vpop.f32.mrb[0].mxu0
        %1087 = vdwg.mxu0
        %v1088 = vpack.c.bf16 %v1083, %v1083
        %1090 = vrot.lane.b32.xlu0 %v1088, 24
        %v1091 = vpop.permute.xlu0 %1090
        %vm1093 = vcmask 257216
        %1094 = vst.msk [vmem:[#allocation3] sm:$0xf] %vm1093, %v1091
        %v1095 = vpack.c.bf16 %v626, %v626
        %1097 = vrot.lane.b32.xlu0 %v1095, 96
        %v1098 = vpop.permute.xlu0 %1097
        %v1100 = vsel %vm633, %v1095, 0
        %v1103 = vsel %vm633, %v1098, 0
        %1105 = vmatprep.subr.bf16.mxu0 0
        %1106 = vmatpush1.bf16.xpose.msra.mxu0 %v1103
        %1107 = vmatprep.subr.bf16.mxu0 0
        %1108 = vmatpush1.bf16.xpose.msra.mxu0 0
        %1109 = vmatprep.subr.bf16.mxu0 0
        %1110 = vmatpush1.bf16.xpose.msra.mxu0 0
        %1111 = vmatprep.subr.bf16.mxu0 0
        %1112 = vmatpush1.bf16.xpose.msra.mxu0 0
        %1113 = vmatprep.subr.bf16.mxu0 0
        %1114 = vmatpush1.bf16.xpose.msra.mxu0 0
        %1115 = vmatprep.subr.bf16.mxu0 0
        %1116 = vmatpush1.bf16.xpose.msra.mxu0 0
        %1117 = vmatprep.subr.bf16.mxu0 0
        %1118 = vmatpush1.bf16.xpose.msra.mxu0 0
        %1119 = vmatprep.subr.bf16.mxu0 0
        %1120 = vmatpush1.bf16.xpose.msra.mxu0 0
        %1121 = vmatprep.subr.bf16.mxu0 0
        %1122 = vmatpush1.bf16.xpose.msra.mxu0 0
        %1123 = vmatprep.subr.bf16.mxu0 0
        %1124 = vmatpush1.bf16.xpose.msra.mxu0 0
        %1125 = vmatprep.subr.bf16.mxu0 0
        %1126 = vmatpush1.bf16.xpose.msra.mxu0 0
        %1127 = vmatprep.subr.bf16.mxu0 0
        %1128 = vmatpush1.bf16.xpose.msra.mxu0 0
        %1129 = vmatprep.subr.bf16.mxu0 0
        %1130 = vmatpush1.bf16.xpose.msra.mxu0 0
        %1131 = vmatprep.subr.bf16.mxu0 0
        %1132 = vmatpush1.bf16.xpose.msra.mxu0 0
        %1133 = vmatprep.subr.bf16.mxu0 0
        %1134 = vmatpush1.bf16.xpose.msra.mxu0 0
        %1135 = vmatprep.subr.bf16.mxu0 0
        %1136 = vmatpush1.bf16.xpose.msra.mxu0 0
        %1137 = vmatprep.mubr.bf16.mxu0 0
        %1138 = vmatmul.mubr.bf16.gmra.mrb[0].mxu0 %v1100
        %v1139 = vpop.f32.mrb[0].mxu0
        %v1140 = vadd.f32 0.0, %v1139
        %v1141 = vpop.f32.mrb[0].mxu0
        %v1142 = vpop.f32.mrb[0].mxu0
        %v1143 = vpop.f32.mrb[0].mxu0
        %1144 = vdwg.mxu0
        %v1145 = vsel %vm633, %v1140, -inf
        %1146 = vmax.xlane.f32.xlu0 %v1145
        %v1147 = vpop.xlane.xlu0 %1146
        %v1148 = vsub.f32 %v1140, %v1147
        %v1149 = vmul.f32 %v1148, 1.442695
        %v1150 = vpow.pop %v1149
        %v1151 = vsel %vm633, %v1150, 0.0
        %1152 = vadd.xlane.f32.xlu0 %v1151
        %v1153 = vpop.xlane.xlu0 %1152
        %v1154 = vrcp.pop %v1153
        %v1155 = vmul.f32 %v1150, %v1154
        %v1156 = vpack.c.bf16 %v1155, %v1155
        %1157 = vrot.lane.b32.xlu0 %v1095, 64
        %v1158 = vpop.permute.xlu0 %1157
        %v1160 = vsel %vm633, %v1156, 0
        %v1163 = vsel %vm697, %v1158, 0
        %1165 = vmatprep.subr.bf16.mxu0 0
        %1166 = vmatpush1.bf16.msra.mxu0 %v1163
        %1167 = vmatprep.subr.bf16.mxu0 0
        %1168 = vmatpush1.bf16.msra.mxu0 0
        %1169 = vmatprep.subr.bf16.mxu0 0
        %1170 = vmatpush1.bf16.msra.mxu0 0
        %1171 = vmatprep.subr.bf16.mxu0 0
        %1172 = vmatpush1.bf16.msra.mxu0 0
        %1173 = vmatprep.subr.bf16.mxu0 0
        %1174 = vmatpush1.bf16.msra.mxu0 0
        %1175 = vmatprep.subr.bf16.mxu0 0
        %1176 = vmatpush1.bf16.msra.mxu0 0
        %1177 = vmatprep.subr.bf16.mxu0 0
        %1178 = vmatpush1.bf16.msra.mxu0 0
        %1179 = vmatprep.subr.bf16.mxu0 0
        %1180 = vmatpush1.bf16.msra.mxu0 0
        %1181 = vmatprep.subr.bf16.mxu0 0
        %1182 = vmatpush1.bf16.msra.mxu0 0
        %1183 = vmatprep.subr.bf16.mxu0 0
        %1184 = vmatpush1.bf16.msra.mxu0 0
        %1185 = vmatprep.subr.bf16.mxu0 0
        %1186 = vmatpush1.bf16.msra.mxu0 0
        %1187 = vmatprep.subr.bf16.mxu0 0
        %1188 = vmatpush1.bf16.msra.mxu0 0
        %1189 = vmatprep.subr.bf16.mxu0 0
        %1190 = vmatpush1.bf16.msra.mxu0 0
        %1191 = vmatprep.subr.bf16.mxu0 0
        %1192 = vmatpush1.bf16.msra.mxu0 0
        %1193 = vmatprep.subr.bf16.mxu0 0
        %1194 = vmatpush1.bf16.msra.mxu0 0
        %1195 = vmatprep.subr.bf16.mxu0 0
        %1196 = vmatpush1.bf16.msra.mxu0 0
        %1197 = vmatprep.mubr.bf16.mxu0 0
        %1198 = vmatmul.mubr.bf16.gmra.mrb[0].mxu0 %v1160
        %v1199 = vpop.f32.mrb[0].mxu0
        %v1200 = vadd.f32 0.0, %v1199
        %v1201 = vpop.f32.mrb[0].mxu0
        %v1202 = vpop.f32.mrb[0].mxu0
        %v1203 = vpop.f32.mrb[0].mxu0
        %1204 = vdwg.mxu0
        %v1205 = vpack.c.bf16 %v1200, %v1200
        %v1207 = vrot.slane %v1205, 4
        %vm1209 = vcmask 64516
        %1210 = vst.msk [vmem:[#allocation3] sm:$0xf0] %vm1209, %v1207
        %1211 = vrot.lane.b32.xlu0 %v1095, 120
        %v1212 = vpop.permute.xlu0 %1211
        %1213 = vrot.lane.b32.xlu0 %v1095, 88
        %v1214 = vpop.permute.xlu0 %1213
        %v1216 = vsel %vm633, %v1212, 0
        %v1219 = vsel %vm633, %v1214, 0
        %1221 = vmatprep.subr.bf16.mxu0 0
        %1222 = vmatpush1.bf16.xpose.msra.mxu0 %v1219
        %1223 = vmatprep.subr.bf16.mxu0 0
        %1224 = vmatpush1.bf16.xpose.msra.mxu0 0
        %1225 = vmatprep.subr.bf16.mxu0 0
        %1226 = vmatpush1.bf16.xpose.msra.mxu0 0
        %1227 = vmatprep.subr.bf16.mxu0 0
        %1228 = vmatpush1.bf16.xpose.msra.mxu0 0
        %1229 = vmatprep.subr.bf16.mxu0 0
        %1230 = vmatpush1.bf16.xpose.msra.mxu0 0
        %1231 = vmatprep.subr.bf16.mxu0 0
        %1232 = vmatpush1.bf16.xpose.msra.mxu0 0
        %1233 = vmatprep.subr.bf16.mxu0 0
        %1234 = vmatpush1.bf16.xpose.msra.mxu0 0
        %1235 = vmatprep.subr.bf16.mxu0 0
        %1236 = vmatpush1.bf16.xpose.msra.mxu0 0
        %1237 = vmatprep.subr.bf16.mxu0 0
        %1238 = vmatpush1.bf16.xpose.msra.mxu0 0
        %1239 = vmatprep.subr.bf16.mxu0 0
        %1240 = vmatpush1.bf16.xpose.msra.mxu0 0
        %1241 = vmatprep.subr.bf16.mxu0 0
        %1242 = vmatpush1.bf16.xpose.msra.mxu0 0
        %1243 = vmatprep.subr.bf16.mxu0 0
        %1244 = vmatpush1.bf16.xpose.msra.mxu0 0
        %1245 = vmatprep.subr.bf16.mxu0 0
        %1246 = vmatpush1.bf16.xpose.msra.mxu0 0
        %1247 = vmatprep.subr.bf16.mxu0 0
        %1248 = vmatpush1.bf16.xpose.msra.mxu0 0
        %1249 = vmatprep.subr.bf16.mxu0 0
        %1250 = vmatpush1.bf16.xpose.msra.mxu0 0
        %1251 = vmatprep.subr.bf16.mxu0 0
        %1252 = vmatpush1.bf16.xpose.msra.mxu0 0
        %1253 = vmatprep.mubr.bf16.mxu0 0
        %1254 = vmatmul.mubr.bf16.gmra.mrb[0].mxu0 %v1216
        %v1255 = vpop.f32.mrb[0].mxu0
        %v1256 = vadd.f32 0.0, %v1255
        %v1257 = vpop.f32.mrb[0].mxu0
        %v1258 = vpop.f32.mrb[0].mxu0
        %v1259 = vpop.f32.mrb[0].mxu0
        %1260 = vdwg.mxu0
        %v1261 = vsel %vm633, %v1256, -inf
        %1262 = vmax.xlane.f32.xlu0 %v1261
        %v1263 = vpop.xlane.xlu0 %1262
        %v1264 = vsub.f32 %v1256, %v1263
        %v1265 = vmul.f32 %v1264, 1.442695
        %v1266 = vpow.pop %v1265
        %v1267 = vsel %vm633, %v1266, 0.0
        %1268 = vadd.xlane.f32.xlu0 %v1267
        %v1269 = vpop.xlane.xlu0 %1268
        %v1270 = vrcp.pop %v1269
        %v1271 = vmul.f32 %v1266, %v1270
        %v1272 = vpack.c.bf16 %v1271, %v1271
        %1273 = vrot.lane.b32.xlu0 %v1095, 56
        %v1274 = vpop.permute.xlu0 %1273
        %v1276 = vsel %vm633, %v1272, 0
        %v1279 = vsel %vm697, %v1274, 0
        %1281 = vmatprep.subr.bf16.mxu0 0
        %1282 = vmatpush1.bf16.msra.mxu0 %v1279
        %1283 = vmatprep.subr.bf16.mxu0 0
        %1284 = vmatpush1.bf16.msra.mxu0 0
        %1285 = vmatprep.subr.bf16.mxu0 0
        %1286 = vmatpush1.bf16.msra.mxu0 0
        %1287 = vmatprep.subr.bf16.mxu0 0
        %1288 = vmatpush1.bf16.msra.mxu0 0
        %1289 = vmatprep.subr.bf16.mxu0 0
        %1290 = vmatpush1.bf16.msra.mxu0 0
        %1291 = vmatprep.subr.bf16.mxu0 0
        %1292 = vmatpush1.bf16.msra.mxu0 0
        %1293 = vmatprep.subr.bf16.mxu0 0
        %1294 = vmatpush1.bf16.msra.mxu0 0
        %1295 = vmatprep.subr.bf16.mxu0 0
        %1296 = vmatpush1.bf16.msra.mxu0 0
        %1297 = vmatprep.subr.bf16.mxu0 0
        %1298 = vmatpush1.bf16.msra.mxu0 0
        %1299 = vmatprep.subr.bf16.mxu0 0
        %1300 = vmatpush1.bf16.msra.mxu0 0
        %1301 = vmatprep.subr.bf16.mxu0 0
        %1302 = vmatpush1.bf16.msra.mxu0 0
        %1303 = vmatprep.subr.bf16.mxu0 0
        %1304 = vmatpush1.bf16.msra.mxu0 0
        %1305 = vmatprep.subr.bf16.mxu0 0
        %1306 = vmatpush1.bf16.msra.mxu0 0
        %1307 = vmatprep.subr.bf16.mxu0 0
        %1308 = vmatpush1.bf16.msra.mxu0 0
        %1309 = vmatprep.subr.bf16.mxu0 0
        %1310 = vmatpush1.bf16.msra.mxu0 0
        %1311 = vmatprep.subr.bf16.mxu0 0
        %1312 = vmatpush1.bf16.msra.mxu0 0
        %1313 = vmatprep.mubr.bf16.mxu0 0
        %1314 = vmatmul.mubr.bf16.gmra.mrb[0].mxu0 %v1276
        %v1315 = vpop.f32.mrb[0].mxu0
        %v1316 = vadd.f32 0.0, %v1315
        %v1317 = vpop.f32.mrb[0].mxu0
        %v1318 = vpop.f32.mrb[0].mxu0
        %v1319 = vpop.f32.mrb[0].mxu0
        %1320 = vdwg.mxu0
        %v1321 = vpack.c.bf16 %v1316, %v1316
        %v1323 = vrot.slane %v1321, 4
        %1324 = vrot.lane.b32.xlu0 %v1323, 8
        %v1325 = vpop.permute.xlu0 %1324
        %vm1327 = vcmask 130116
        %1328 = vst.msk [vmem:[#allocation3] sm:$0xf0] %vm1327, %v1325
        %1329 = vrot.lane.b32.xlu0 %v1095, 112
        %v1330 = vpop.permute.xlu0 %1329
        %1331 = vrot.lane.b32.xlu0 %v1095, 80
        %v1332 = vpop.permute.xlu0 %1331
        %v1334 = vsel %vm633, %v1330, 0
        %v1337 = vsel %vm633, %v1332, 0
        %1339 = vmatprep.subr.bf16.mxu0 0
        %1340 = vmatpush1.bf16.xpose.msra.mxu0 %v1337
        %1341 = vmatprep.subr.bf16.mxu0 0
        %1342 = vmatpush1.bf16.xpose.msra.mxu0 0
        %1343 = vmatprep.subr.bf16.mxu0 0
        %1344 = vmatpush1.bf16.xpose.msra.mxu0 0
        %1345 = vmatprep.subr.bf16.mxu0 0
        %1346 = vmatpush1.bf16.xpose.msra.mxu0 0
        %1347 = vmatprep.subr.bf16.mxu0 0
        %1348 = vmatpush1.bf16.xpose.msra.mxu0 0
        %1349 = vmatprep.subr.bf16.mxu0 0
        %1350 = vmatpush1.bf16.xpose.msra.mxu0 0
        %1351 = vmatprep.subr.bf16.mxu0 0
        %1352 = vmatpush1.bf16.xpose.msra.mxu0 0
        %1353 = vmatprep.subr.bf16.mxu0 0
        %1354 = vmatpush1.bf16.xpose.msra.mxu0 0
        %1355 = vmatprep.subr.bf16.mxu0 0
        %1356 = vmatpush1.bf16.xpose.msra.mxu0 0
        %1357 = vmatprep.subr.bf16.mxu0 0
        %1358 = vmatpush1.bf16.xpose.msra.mxu0 0
        %1359 = vmatprep.subr.bf16.mxu0 0
        %1360 = vmatpush1.bf16.xpose.msra.mxu0 0
        %1361 = vmatprep.subr.bf16.mxu0 0
        %1362 = vmatpush1.bf16.xpose.msra.mxu0 0
        %1363 = vmatprep.subr.bf16.mxu0 0
        %1364 = vmatpush1.bf16.xpose.msra.mxu0 0
        %1365 = vmatprep.subr.bf16.mxu0 0
        %1366 = vmatpush1.bf16.xpose.msra.mxu0 0
        %1367 = vmatprep.subr.bf16.mxu0 0
        %1368 = vmatpush1.bf16.xpose.msra.mxu0 0
        %1369 = vmatprep.subr.bf16.mxu0 0
        %1370 = vmatpush1.bf16.xpose.msra.mxu0 0
        %1371 = vmatprep.mubr.bf16.mxu0 0
        %1372 = vmatmul.mubr.bf16.gmra.mrb[0].mxu0 %v1334
        %v1373 = vpop.f32.mrb[0].mxu0
        %v1374 = vadd.f32 0.0, %v1373
        %v1375 = vpop.f32.mrb[0].mxu0
        %v1376 = vpop.f32.mrb[0].mxu0
        %v1377 = vpop.f32.mrb[0].mxu0
        %1378 = vdwg.mxu0
        %v1379 = vsel %vm633, %v1374, -inf
        %1380 = vmax.xlane.f32.xlu0 %v1379
        %v1381 = vpop.xlane.xlu0 %1380
        %v1382 = vsub.f32 %v1374, %v1381
        %v1383 = vmul.f32 %v1382, 1.442695
        %v1384 = vpow.pop %v1383
        %v1385 = vsel %vm633, %v1384, 0.0
        %1386 = vadd.xlane.f32.xlu0 %v1385
        %v1387 = vpop.xlane.xlu0 %1386
        %v1388 = vrcp.pop %v1387
        %v1389 = vmul.f32 %v1384, %v1388
        %v1390 = vpack.c.bf16 %v1389, %v1389
        %1391 = vrot.lane.b32.xlu0 %v1095, 48
        %v1392 = vpop.permute.xlu0 %1391
        %v1394 = vsel %vm633, %v1390, 0
        %v1397 = vsel %vm697, %v1392, 0
        %1399 = vmatprep.subr.bf16.mxu0 0
        %1400 = vmatpush1.bf16.msra.mxu0 %v1397
        %1401 = vmatprep.subr.bf16.mxu0 0
        %1402 = vmatpush1.bf16.msra.mxu0 0
        %1403 = vmatprep.subr.bf16.mxu0 0
        %1404 = vmatpush1.bf16.msra.mxu0 0
        %1405 = vmatprep.subr.bf16.mxu0 0
        %1406 = vmatpush1.bf16.msra.mxu0 0
        %1407 = vmatprep.subr.bf16.mxu0 0
        %1408 = vmatpush1.bf16.msra.mxu0 0
        %1409 = vmatprep.subr.bf16.mxu0 0
        %1410 = vmatpush1.bf16.msra.mxu0 0
        %1411 = vmatprep.subr.bf16.mxu0 0
        %1412 = vmatpush1.bf16.msra.mxu0 0
        %1413 = vmatprep.subr.bf16.mxu0 0
        %1414 = vmatpush1.bf16.msra.mxu0 0
        %1415 = vmatprep.subr.bf16.mxu0 0
        %1416 = vmatpush1.bf16.msra.mxu0 0
        %1417 = vmatprep.subr.bf16.mxu0 0
        %1418 = vmatpush1.bf16.msra.mxu0 0
        %1419 = vmatprep.subr.bf16.mxu0 0
        %1420 = vmatpush1.bf16.msra.mxu0 0
        %1421 = vmatprep.subr.bf16.mxu0 0
        %1422 = vmatpush1.bf16.msra.mxu0 0
        %1423 = vmatprep.subr.bf16.mxu0 0
        %1424 = vmatpush1.bf16.msra.mxu0 0
        %1425 = vmatprep.subr.bf16.mxu0 0
        %1426 = vmatpush1.bf16.msra.mxu0 0
        %1427 = vmatprep.subr.bf16.mxu0 0
        %1428 = vmatpush1.bf16.msra.mxu0 0
        %1429 = vmatprep.subr.bf16.mxu0 0
        %1430 = vmatpush1.bf16.msra.mxu0 0
        %1431 = vmatprep.mubr.bf16.mxu0 0
        %1432 = vmatmul.mubr.bf16.gmra.mrb[0].mxu0 %v1394
        %v1433 = vpop.f32.mrb[0].mxu0
        %v1434 = vadd.f32 0.0, %v1433
        %v1435 = vpop.f32.mrb[0].mxu0
        %v1436 = vpop.f32.mrb[0].mxu0
        %v1437 = vpop.f32.mrb[0].mxu0
        %1438 = vdwg.mxu0
        %v1439 = vpack.c.bf16 %v1434, %v1434
        %v1441 = vrot.slane %v1439, 4
        %1442 = vrot.lane.b32.xlu0 %v1441, 16
        %v1443 = vpop.permute.xlu0 %1442
        %vm1445 = vcmask 195716
        %1446 = vst.msk [vmem:[#allocation3] sm:$0xf0] %vm1445, %v1443
        %1447 = vrot.lane.b32.xlu0 %v1095, 104
        %v1448 = vpop.permute.xlu0 %1447
        %1449 = vrot.lane.b32.xlu0 %v1095, 72
        %v1450 = vpop.permute.xlu0 %1449
        %v1452 = vsel %vm633, %v1448, 0
        %v1455 = vsel %vm633, %v1450, 0
        %1457 = vmatprep.subr.bf16.mxu0 0
        %1458 = vmatpush1.bf16.xpose.msra.mxu0 %v1455
        %1459 = vmatprep.subr.bf16.mxu0 0
        %1460 = vmatpush1.bf16.xpose.msra.mxu0 0
        %1461 = vmatprep.subr.bf16.mxu0 0
        %1462 = vmatpush1.bf16.xpose.msra.mxu0 0
        %1463 = vmatprep.subr.bf16.mxu0 0
        %1464 = vmatpush1.bf16.xpose.msra.mxu0 0
        %1465 = vmatprep.subr.bf16.mxu0 0
        %1466 = vmatpush1.bf16.xpose.msra.mxu0 0
        %1467 = vmatprep.subr.bf16.mxu0 0
        %1468 = vmatpush1.bf16.xpose.msra.mxu0 0
        %1469 = vmatprep.subr.bf16.mxu0 0
        %1470 = vmatpush1.bf16.xpose.msra.mxu0 0
        %1471 = vmatprep.subr.bf16.mxu0 0
        %1472 = vmatpush1.bf16.xpose.msra.mxu0 0
        %1473 = vmatprep.subr.bf16.mxu0 0
        %1474 = vmatpush1.bf16.xpose.msra.mxu0 0
        %1475 = vmatprep.subr.bf16.mxu0 0
        %1476 = vmatpush1.bf16.xpose.msra.mxu0 0
        %1477 = vmatprep.subr.bf16.mxu0 0
        %1478 = vmatpush1.bf16.xpose.msra.mxu0 0
        %1479 = vmatprep.subr.bf16.mxu0 0
        %1480 = vmatpush1.bf16.xpose.msra.mxu0 0
        %1481 = vmatprep.subr.bf16.mxu0 0
        %1482 = vmatpush1.bf16.xpose.msra.mxu0 0
        %1483 = vmatprep.subr.bf16.mxu0 0
        %1484 = vmatpush1.bf16.xpose.msra.mxu0 0
        %1485 = vmatprep.subr.bf16.mxu0 0
        %1486 = vmatpush1.bf16.xpose.msra.mxu0 0
        %1487 = vmatprep.subr.bf16.mxu0 0
        %1488 = vmatpush1.bf16.xpose.msra.mxu0 0
        %1489 = vmatprep.mubr.bf16.mxu0 0
        %1490 = vmatmul.mubr.bf16.gmra.mrb[0].mxu0 %v1452
        %v1491 = vpop.f32.mrb[0].mxu0
        %v1492 = vadd.f32 0.0, %v1491
        %v1493 = vpop.f32.mrb[0].mxu0
        %v1494 = vpop.f32.mrb[0].mxu0
        %v1495 = vpop.f32.mrb[0].mxu0
        %1496 = vdwg.mxu0
        %v1497 = vsel %vm633, %v1492, -inf
        %1498 = vmax.xlane.f32.xlu0 %v1497
        %v1499 = vpop.xlane.xlu0 %1498
        %v1500 = vsub.f32 %v1492, %v1499
        %v1501 = vmul.f32 %v1500, 1.442695
        %v1502 = vpow.pop %v1501
        %v1503 = vsel %vm633, %v1502, 0.0
        %1504 = vadd.xlane.f32.xlu0 %v1503
        %v1505 = vpop.xlane.xlu0 %1504
        %v1506 = vrcp.pop %v1505
        %v1507 = vmul.f32 %v1502, %v1506
        %v1508 = vpack.c.bf16 %v1507, %v1507
        %1509 = vrot.lane.b32.xlu0 %v1095, 40
        %v1510 = vpop.permute.xlu0 %1509
        %v1512 = vsel %vm633, %v1508, 0
        %v1515 = vsel %vm697, %v1510, 0
        %1517 = vmatprep.subr.bf16.mxu0 0
        %1518 = vmatpush1.bf16.msra.mxu0 %v1515
        %1519 = vmatprep.subr.bf16.mxu0 0
        %1520 = vmatpush1.bf16.msra.mxu0 0
        %1521 = vmatprep.subr.bf16.mxu0 0
        %1522 = vmatpush1.bf16.msra.mxu0 0
        %1523 = vmatprep.subr.bf16.mxu0 0
        %1524 = vmatpush1.bf16.msra.mxu0 0
        %1525 = vmatprep.subr.bf16.mxu0 0
        %1526 = vmatpush1.bf16.msra.mxu0 0
        %1527 = vmatprep.subr.bf16.mxu0 0
        %1528 = vmatpush1.bf16.msra.mxu0 0
        %1529 = vmatprep.subr.bf16.mxu0 0
        %1530 = vmatpush1.bf16.msra.mxu0 0
        %1531 = vmatprep.subr.bf16.mxu0 0
        %1532 = vmatpush1.bf16.msra.mxu0 0
        %1533 = vmatprep.subr.bf16.mxu0 0
        %1534 = vmatpush1.bf16.msra.mxu0 0
        %1535 = vmatprep.subr.bf16.mxu0 0
        %1536 = vmatpush1.bf16.msra.mxu0 0
        %1537 = vmatprep.subr.bf16.mxu0 0
        %1538 = vmatpush1.bf16.msra.mxu0 0
        %1539 = vmatprep.subr.bf16.mxu0 0
        %1540 = vmatpush1.bf16.msra.mxu0 0
        %1541 = vmatprep.subr.bf16.mxu0 0
        %1542 = vmatpush1.bf16.msra.mxu0 0
        %1543 = vmatprep.subr.bf16.mxu0 0
        %1544 = vmatpush1.bf16.msra.mxu0 0
        %1545 = vmatprep.subr.bf16.mxu0 0
        %1546 = vmatpush1.bf16.msra.mxu0 0
        %1547 = vmatprep.subr.bf16.mxu0 0
        %1548 = vmatpush1.bf16.msra.mxu0 0
        %1549 = vmatprep.mubr.bf16.mxu0 0
        %1550 = vmatmul.mubr.bf16.gmra.mrb[0].mxu0 %v1512
        %v1551 = vpop.f32.mrb[0].mxu0
        %v1552 = vadd.f32 0.0, %v1551
        %v1553 = vpop.f32.mrb[0].mxu0
        %v1554 = vpop.f32.mrb[0].mxu0
        %v1555 = vpop.f32.mrb[0].mxu0
        %1556 = vdwg.mxu0
        %v1557 = vpack.c.bf16 %v1552, %v1552
        %v1559 = vrot.slane %v1557, 4
        %1560 = vrot.lane.b32.xlu0 %v1559, 24
        %v1561 = vpop.permute.xlu0 %1560
        %vm1563 = vcmask 261316
        %1564 = vst.msk [vmem:[#allocation3] sm:$0xf0] %vm1563, %v1561
        %v1565 = vld [vmem:[#allocation3] sm:$0xff]
        %v1566 = vld [vmem:[%s434] sm:$0xf]
        %v1567 = vld [vmem:[%s434 + $0x4] sm:$0xf]
        %v1568 = vld [vmem:[%s434 + $0x8] sm:$0xf]
        %v1569 = vld [vmem:[%s434 + $0xc] sm:$0xf]
        %v1570 = vlaneseq
        %v1571 = vshrl.u32 %v1570, 7
        %v1572 = vsub.s32 2, %v1571
        %v1573 = vrot.slane %v527, %v1572
        %v1578 = vunpack.c.l.b16 %v1566
        %v1579 = vunpack.c.l.b16 %v1567
        %v1580 = vunpack.c.l.b16 %v1568
        %v1581 = vunpack.c.l.b16 %v1569
        %v1582 = vpack.c.b16 %v1579, %v1578
        %v1583 = vpack.c.b16 %v1581, %v1580
        %v1587 = vsel %vm528, %v1565, 0
        %1589 = vmatprep.subr.bf16.mxu0 0
        %1590 = vmatpush1.bf16.msra.mxu0 %v1582
        %1591 = vmatprep.subr.bf16.mxu0 0
        %1592 = vmatpush1.bf16.msra.mxu0 %v1583
        %1593 = vmatprep.subr.bf16.mxu0 0
        %1594 = vmatpush1.bf16.msra.mxu0 0
        %1595 = vmatprep.subr.bf16.mxu0 0
        %1596 = vmatpush1.bf16.msra.mxu0 0
        %1597 = vmatprep.subr.bf16.mxu0 0
        %1598 = vmatpush1.bf16.msra.mxu0 0
        %1599 = vmatprep.subr.bf16.mxu0 0
        %1600 = vmatpush1.bf16.msra.mxu0 0
        %1601 = vmatprep.subr.bf16.mxu0 0
        %1602 = vmatpush1.bf16.msra.mxu0 0
        %1603 = vmatprep.subr.bf16.mxu0 0
        %1604 = vmatpush1.bf16.msra.mxu0 0
        %1605 = vmatprep.subr.bf16.mxu0 0
        %1606 = vmatpush1.bf16.msra.mxu0 0
        %1607 = vmatprep.subr.bf16.mxu0 0
        %1608 = vmatpush1.bf16.msra.mxu0 0
        %1609 = vmatprep.subr.bf16.mxu0 0
        %1610 = vmatpush1.bf16.msra.mxu0 0
        %1611 = vmatprep.subr.bf16.mxu0 0
        %1612 = vmatpush1.bf16.msra.mxu0 0
        %1613 = vmatprep.subr.bf16.mxu0 0
        %1614 = vmatpush1.bf16.msra.mxu0 0
        %1615 = vmatprep.subr.bf16.mxu0 0
        %1616 = vmatpush1.bf16.msra.mxu0 0
        %1617 = vmatprep.subr.bf16.mxu0 0
        %1618 = vmatpush1.bf16.msra.mxu0 0
        %1619 = vmatprep.subr.bf16.mxu0 0
        %1620 = vmatpush1.bf16.msra.mxu0 0
        %1621 = vmatprep.mubr.bf16.mxu0 0
        %1622 = vmatmul.mubr.bf16.gmra.mrb[0].mxu0 %v1587
        %v1623 = vpop.f32.mrb[0].mxu0
        %v1624 = vadd.f32 %v1573, %v1623
        %v1625 = vpop.f32.mrb[0].mxu0
        %v1626 = vpop.f32.mrb[0].mxu0
        %v1627 = vadd.f32 %v1573, %v1626
        %v1628 = vpop.f32.mrb[0].mxu0
        %1629 = vdwg.mxu0
        %v1630 = vadd.f32 %v1624, %v525
        %v1631 = vadd.f32 %v1627, %v526
        %v1632 = vsel %vm528, %v1630, 0.0
        %1633 = vadd.xlane.f32.xlu0 %v1632
        %v1634 = vpop.xlane.xlu0 %1633
        %v1635 = vsel %vm528, %v1631, 0.0
        %1636 = vadd.xlane.f32.xlu0 %v1635
        %v1637 = vpop.xlane.xlu0 %1636
        %v1638 = vmul.f32 %v1634, %v535
        %v1639 = vmul.f32 %v1637, %v535
        %v1640 = vsub.f32 %v1630, %v1638
        %v1641 = vsub.f32 %v1631, %v1639
        %v1642 = vmul.f32 %v1640, %v1640
        %v1643 = vmul.f32 %v1641, %v1641
        %v1644 = vsel %vm528, %v1642, 0.0
        %1645 = vadd.xlane.f32.xlu0 %v1644
        %v1646 = vpop.xlane.xlu0 %1645
        %v1647 = vsel %vm528, %v1643, 0.0
        %1648 = vadd.xlane.f32.xlu0 %v1647
        %v1649 = vpop.xlane.xlu0 %1648
        %v1650 = vmul.f32 %v1646, %v535
        %v1651 = vmul.f32 %v1649, %v535
        %v1652 = vadd.f32 %v1650, 1e-05
        %v1653 = vadd.f32 %v1651, 1e-05
        %v1654 = vrsqrt.pop %v1652
        %v1655 = vrsqrt.pop %v1653
        %v1656 = vmul.f32 %v1640, %v1654
        %v1657 = vmul.f32 %v1641, %v1655
        %v1658 = vlaneseq
        %v1659 = vshrl.u32 %v1658, 7
        %v1660 = vsub.s32 3, %v1659
        %v1661 = vrot.slane %v527, %v1660
        %v1662 = vmul.f32 %v1656, %v1661
        %v1663 = vmul.f32 %v1657, %v1661
        %v1664 = vlaneseq
        %v1665 = vshrl.u32 %v1664, 7
        %v1666 = vsub.s32 4, %v1665
        %v1667 = vrot.slane %v527, %v1666
        %v1668 = vadd.f32 %v1662, %v1667
        %v1669 = vadd.f32 %v1663, %v1667
        %v1670 = vpack.c.bf16 %v1669, %v1668
        %v1671 = vld [vmem:[%s443] sm:$0xf]
        %v1672 = vld [vmem:[%s443 + $0x4] sm:$0xf]
        %v1673 = vld [vmem:[%s443 + $0x8] sm:$0xf]
        %v1674 = vld [vmem:[%s443 + $0xc] sm:$0xf]
        %v1675 = vlaneseq
        %v1676 = vshrl.u32 %v1675, 7
        %v1677 = vsub.s32 5, %v1676
        %v1678 = vrot.slane %v527, %v1677
        %v1683 = vunpack.c.l.b16 %v1671
        %v1684 = vunpack.c.l.b16 %v1672
        %v1685 = vunpack.c.l.b16 %v1673
        %v1686 = vunpack.c.l.b16 %v1674
        %v1687 = vpack.c.b16 %v1684, %v1683
        %v1688 = vpack.c.b16 %v1686, %v1685
        %v1692 = vsel %vm528, %v1670, 0
        %1694 = vmatprep.subr.bf16.mxu0 0
        %1695 = vmatpush1.bf16.msra.mxu0 %v1687
        %1696 = vmatprep.subr.bf16.mxu0 0
        %1697 = vmatpush1.bf16.msra.mxu0 %v1688
        %1698 = vmatprep.subr.bf16.mxu0 0
        %1699 = vmatpush1.bf16.msra.mxu0 0
        %1700 = vmatprep.subr.bf16.mxu0 0
        %1701 = vmatpush1.bf16.msra.mxu0 0
        %1702 = vmatprep.subr.bf16.mxu0 0
        %1703 = vmatpush1.bf16.msra.mxu0 0
        %1704 = vmatprep.subr.bf16.mxu0 0
        %1705 = vmatpush1.bf16.msra.mxu0 0
        %1706 = vmatprep.subr.bf16.mxu0 0
        %1707 = vmatpush1.bf16.msra.mxu0 0
        %1708 = vmatprep.subr.bf16.mxu0 0
        %1709 = vmatpush1.bf16.msra.mxu0 0
        %1710 = vmatprep.subr.bf16.mxu0 0
        %1711 = vmatpush1.bf16.msra.mxu0 0
        %1712 = vmatprep.subr.bf16.mxu0 0
        %1713 = vmatpush1.bf16.msra.mxu0 0
        %1714 = vmatprep.subr.bf16.mxu0 0
        %1715 = vmatpush1.bf16.msra.mxu0 0
        %1716 = vmatprep.subr.bf16.mxu0 0
        %1717 = vmatpush1.bf16.msra.mxu0 0
        %1718 = vmatprep.subr.bf16.mxu0 0
        %1719 = vmatpush1.bf16.msra.mxu0 0
        %1720 = vmatprep.subr.bf16.mxu0 0
        %1721 = vmatpush1.bf16.msra.mxu0 0
        %1722 = vmatprep.subr.bf16.mxu0 0
        %1723 = vmatpush1.bf16.msra.mxu0 0
        %1724 = vmatprep.subr.bf16.mxu0 0
        %1725 = vmatpush1.bf16.msra.mxu0 0
        %1726 = vmatprep.mubr.bf16.mxu0 0
        %1727 = vmatmul.mubr.bf16.gmra.mrb[0].mxu0 %v1692
        %v1728 = vpop.f32.mrb[0].mxu0
        %v1729 = vadd.f32 %v1678, %v1728
        %v1730 = vpop.f32.mrb[0].mxu0
        %v1731 = vpop.f32.mrb[0].mxu0
        %v1732 = vadd.f32 %v1678, %v1731
        %v1733 = vpop.f32.mrb[0].mxu0
        %1734 = vdwg.mxu0
        %v1735 = vmul.f32 %v1729, %v1729
        %v1736 = vmul.f32 %v1732, %v1732
        %v1737 = vmul.f32 %v1729, %v1735
        %v1738 = vmul.f32 %v1732, %v1736
        %v1739 = vmul.f32 %v1737, 0.044715
        %v1740 = vmul.f32 %v1738, 0.044715
        %v1741 = vadd.f32 %v1729, %v1739
        %v1742 = vadd.f32 %v1732, %v1740
        %v1743 = vmul.f32 %v1741, 0.7978846
        %v1744 = vmul.f32 %v1742, 0.7978846
        %v1745 = vtanh.pop %v1743
        %v1746 = vtanh.pop %v1744
        %v1747 = vadd.f32 %v1745, 1.0
        %v1748 = vadd.f32 %v1746, 1.0
        %v1749 = vmul.f32 %v1747, 0.5
        %v1750 = vmul.f32 %v1748, 0.5
        %v1751 = vmul.f32 %v1729, %v1749
        %v1752 = vmul.f32 %v1732, %v1750
        %v1753 = vpack.c.bf16 %v1752, %v1751
        %v1754 = vld [vmem:[%s452] sm:$0xf]
        %v1755 = vld [vmem:[%s452 + $0x4] sm:$0xf]
        %v1756 = vld [vmem:[%s452 + $0x8] sm:$0xf]
        %v1757 = vld [vmem:[%s452 + $0xc] sm:$0xf]
        %v1758 = vld [vmem:[%s452 + $0x10] sm:$0xf]
        %v1759 = vld [vmem:[%s452 + $0x14] sm:$0xf]
        %v1760 = vld [vmem:[%s452 + $0x18] sm:$0xf]
        %v1761 = vld [vmem:[%s452 + $0x1c] sm:$0xf]
        %v1762 = vlaneseq
        %v1763 = vshrl.u32 %v1762, 7
        %v1764 = vsub.s32 6, %v1763
        %v1765 = vrot.slane %v527, %v1764
        %v1774 = vunpack.c.l.b16 %v1754
        %v1775 = vunpack.c.l.b16 %v1755
        %v1776 = vunpack.c.l.b16 %v1756
        %v1777 = vunpack.c.l.b16 %v1757
        %v1778 = vunpack.c.l.b16 %v1758
        %v1779 = vunpack.c.l.b16 %v1759
        %v1780 = vunpack.c.l.b16 %v1760
        %v1781 = vunpack.c.l.b16 %v1761
        %v1782 = vpack.c.b16 %v1775, %v1774
        %v1783 = vpack.c.b16 %v1777, %v1776
        %v1784 = vpack.c.b16 %v1779, %v1778
        %v1785 = vpack.c.b16 %v1781, %v1780
        %vm1790 = vcmask 523264
        %v1792 = vsel %vm1790, %v1753, 0
        %1794 = vmatprep.subr.bf16.mxu0 0
        %1795 = vmatpush1.bf16.msra.mxu0 %v1782
        %1796 = vmatprep.subr.bf16.mxu0 0
        %1797 = vmatpush1.bf16.msra.mxu0 %v1783
        %1798 = vmatprep.subr.bf16.mxu0 0
        %1799 = vmatpush1.bf16.msra.mxu0 %v1784
        %1800 = vmatprep.subr.bf16.mxu0 0
        %1801 = vmatpush1.bf16.msra.mxu0 %v1785
        %1802 = vmatprep.subr.bf16.mxu0 0
        %1803 = vmatpush1.bf16.msra.mxu0 0
        %1804 = vmatprep.subr.bf16.mxu0 0
        %1805 = vmatpush1.bf16.msra.mxu0 0
        %1806 = vmatprep.subr.bf16.mxu0 0
        %1807 = vmatpush1.bf16.msra.mxu0 0
        %1808 = vmatprep.subr.bf16.mxu0 0
        %1809 = vmatpush1.bf16.msra.mxu0 0
        %1810 = vmatprep.subr.bf16.mxu0 0
        %1811 = vmatpush1.bf16.msra.mxu0 0
        %1812 = vmatprep.subr.bf16.mxu0 0
        %1813 = vmatpush1.bf16.msra.mxu0 0
        %1814 = vmatprep.subr.bf16.mxu0 0
        %1815 = vmatpush1.bf16.msra.mxu0 0
        %1816 = vmatprep.subr.bf16.mxu0 0
        %1817 = vmatpush1.bf16.msra.mxu0 0
        %1818 = vmatprep.subr.bf16.mxu0 0
        %1819 = vmatpush1.bf16.msra.mxu0 0
        %1820 = vmatprep.subr.bf16.mxu0 0
        %1821 = vmatpush1.bf16.msra.mxu0 0
        %1822 = vmatprep.subr.bf16.mxu0 0
        %1823 = vmatpush1.bf16.msra.mxu0 0
        %1824 = vmatprep.subr.bf16.mxu0 0
        %1825 = vmatpush1.bf16.msra.mxu0 0
        %1826 = vmatprep.mubr.bf16.mxu0 0
        %1827 = vmatmul.mubr.bf16.gmra.mrb[0].mxu0 %v1792
        %v1828 = vpop.f32.mrb[0].mxu0
        %v1829 = vadd.f32 %v1765, %v1828
        %v1830 = vpop.f32.mrb[0].mxu0
        %v1831 = vpop.f32.mrb[0].mxu0
        %v1832 = vadd.f32 %v1765, %v1831
        %v1833 = vpop.f32.mrb[0].mxu0
        %1834 = vdwg.mxu0
        %v1835 = vadd.f32 %v1829, %v1630
        %v1836 = vadd.f32 %v1832, %v1631
        %1837 = vst.msk [vmem:[#allocation2] sm:$0xff] %vm528, %v1835
        %1838 = vst.msk [vmem:[#allocation2 + $0x8] sm:$0xff] %vm528, %v1836
        %p1839 = scmp.eq.s32.totalorder %s38, 1
        // Predicated region
        $region81: #{transformer_forward.1} parent=47 // pred_check
          %p1840 = pneg %p1839
        $region82: #{transformer_forward.1} parent=47 // pred_check_branch
          %1842 = sbr.rel (%p1840) target = $region84
        $region83: #{transformer_forward.1} parent=47 // pred_region
          %v1843 = vld [vmem:[#allocation15] sm:$0x3]
          %v1844 = vsel %vm528, %v1835, 0.0
          %1845 = vadd.xlane.f32.xlu0 %v1844
          %v1846 = vpop.xlane.xlu0 %1845
          %v1847 = vsel %vm528, %v1836, 0.0
          %1848 = vadd.xlane.f32.xlu0 %v1847
          %v1849 = vpop.xlane.xlu0 %1848
          %v1850 = vmul.f32 %v1846, %v535
          %v1851 = vmul.f32 %v1849, %v535
          %v1852 = vsub.f32 %v1835, %v1850
          %v1853 = vsub.f32 %v1836, %v1851
          %v1854 = vmul.f32 %v1852, %v1852
          %v1855 = vmul.f32 %v1853, %v1853
          %v1856 = vsel %vm528, %v1854, 0.0
          %1857 = vadd.xlane.f32.xlu0 %v1856
          %v1858 = vpop.xlane.xlu0 %1857
          %v1859 = vsel %vm528, %v1855, 0.0
          %1860 = vadd.xlane.f32.xlu0 %v1859
          %v1861 = vpop.xlane.xlu0 %1860
          %v1862 = vmul.f32 %v1858, %v535
          %v1863 = vmul.f32 %v1861, %v535
          %v1864 = vadd.f32 %v1862, 1e-05
          %v1865 = vadd.f32 %v1863, 1e-05
          %v1866 = vrsqrt.pop %v1864
          %v1867 = vrsqrt.pop %v1865
          %v1868 = vmul.f32 %v1852, %v1866
          %v1869 = vmul.f32 %v1853, %v1867
          %v1870 = vlaneseq
          %v1871 = vshrl.u32 %v1870, 7
          %v1872 = vsub.s32 0, %v1871
          %v1873 = vrot.slane %v1843, %v1872
          %v1874 = vmul.f32 %v1868, %v1873
          %v1875 = vmul.f32 %v1869, %v1873
          %v1876 = vlaneseq
          %v1877 = vshrl.u32 %v1876, 7
          %v1878 = vsub.s32 1, %v1877
          %v1879 = vrot.slane %v1843, %v1878
          %v1880 = vadd.f32 %v1874, %v1879
          %v1881 = vadd.f32 %v1875, %v1879
          %1882 = vst.msk [vmem:[%s511] sm:$0xff] %vm528, %v1880
          %s1883 = scalar_lea.vmem %s511, 8 [#allocation16]
          %1884 = vst.msk [vmem:[%s1883] sm:$0xff] %vm528, %v1881
        $region84: #{transformer_forward.1} parent=47 // pred_fallthru
          _
        %s1885 = sand.u32 %s230, 1
        %s1886 = scalar_lea.sflag [#allocation6], %s1885
        %s1887 = sand.u32 %s230, 1
        %s1888 = smul.addr %s1887, 16
        %s1889 = scalar_lea.vmem [#allocation16], %s1888
        // Predicated region
        $region85: #{transformer_forward.1} parent=47 // pred_check
          %p1890 = pneg %p240
        $region86: #{transformer_forward.1} parent=47 // pred_check_branch
          %1892 = sbr.rel (%p1890) target = $region88
        $region87: #{transformer_forward.1} parent=47 // pred_region
          %s1893 = smul.u32 2, %s37
          %s1895 = ssub.s32 256, 256
          %1896 = vsyncadd %s1886, %s1895
          %s1897 = smul.addr %s1893, 128
          %s1898 = scalar_lea.hbm %s7, %s1897
          %s1899 = sshll.u32 %s1889, 4
          %s1900 = int_to_ptr.vmem [resolvable:$true] %s1899
          %1905 = dma.vmem_to_hbm [thread:$0]  %s1900, 256, %s1898, %s1886, 128, 128, 8
        $region88: #{transformer_forward.1} parent=47 // pred_fallthru
          _
      $region48: #{transformer_forward.1} parent=5 // pred_fallthru
        _
      %p1906 = scmp.le.s32.totalorder 2, %s28
      // Predicated region
      $region89: #{transformer_forward.1} parent=5 // pred_check
        %p1907 = pneg %p1906
      $region90: #{transformer_forward.1} parent=5 // pred_check_branch
        %1909 = sbr.rel (%p1907) target = $region92
      $region91: #{transformer_forward.1} parent=5 // pred_region
        %s1910 = ssub.s32 %s28, 2
        // Predicated region
        $region93: #{transformer_forward.1} parent=91 // pred_check
          %p1911 = pneg %p246
        $region94: #{transformer_forward.1} parent=91 // pred_check_branch
          %1913 = sbr.rel (%p1911) target = $region96
        $region95: #{transformer_forward.1} parent=91 // pred_region
          %s1914 = sand.u32 %s231, 1
          %s1915 = scalar_lea.sflag [#allocation6], %s1914
          %s1916 = sand.u32 %s231, 1
          %s1917 = smul.addr %s1916, 16
          %s1918 = scalar_lea.vmem [#allocation16], %s1917
          %1919 = dma.done %s1915, 256
        $region96: #{transformer_forward.1} parent=91 // pred_fallthru
          _
      $region92: #{transformer_forward.1} parent=5 // pred_fallthru
        _
    $region6: #{transformer_forward.1} parent=1 // loop_footer
      %s32 = sadd.s32 1, %s28
    $region7: #{transformer_forward.1} parent=1 // loop_footer_branch
      %27 = sbr.rel target = $region3
    $region8: #{transformer_forward.1} parent=1 // loop_exit
      _
    %1920 = vsyncpa [#allocation5], 1
    %s1921 = scalar_lea.sflag [#allocation5], 1
    %1922 = vsyncpa %s1921, 1
    %1923 = vsyncpa [#allocation8], 1
    %s1924 = scalar_lea.sflag [#allocation8], 1
    %1925 = vsyncpa %s1924, 1
    %1926 = vsyncpa [#allocation11], 1
    %s1927 = scalar_lea.sflag [#allocation11], 1
    %1928 = vsyncpa %s1927, 1
    %1929 = vsyncpa [#allocation14], 1
    %s1930 = scalar_lea.sflag [#allocation14], 1
    %1931 = vsyncpa %s1930, 1
    %1932 = vsyncpa [#allocation6], 1
    %s1933 = scalar_lea.sflag [#allocation6], 1
    %1934 = vsyncpa %s1933, 1

</llo_original>
